<compile_context>
chip_gen: v6e
topology: v6e:2x2x1
jax: 0.10.0
libtpu: 0.0.40
codegen_flags: <defaults>
</compile_context>

<pallas_src>
import jax
import jax.numpy as jnp
from jax.experimental import pallas as pl
from jax.experimental.pallas import tpu as pltpu

HIDDEN = 400
HIDDEN_PAD = 512  # lane-aligned hidden size (zero padded)


def _round_up(x, m):
    return (x + m - 1) // m * m


def _mlp_logsoftmax_kernel(x_ref, w1_ref, b1_ref, w2_ref, b2_ref, w3d_ref, b3d_ref, o_ref):
    # Transposed layout: batch on lanes.  x_ref: [20, TB] f32.
    # Weight/bias BlockSpecs use constant index maps -> DMA'd once, VMEM-resident
    # while batch tiles stream through.
    x = x_ref[...].astype(jnp.bfloat16)                                  # [20, TB]

    # layer1 + layer2 (ReLU). bf16 inputs, f32 accumulation on the MXU.
    # Fuse ReLU with the bf16 downcast so only the bf16 activation stays live.
    h1f = jnp.dot(w1_ref[...], x, preferred_element_type=jnp.float32) + b1_ref[...]
    h1 = jnp.maximum(h1f, 0.0).astype(jnp.bfloat16)                      # [512, TB]

    # layer3 + layer4 (ReLU)
    h2f = jnp.dot(w2_ref[...], h1, preferred_element_type=jnp.float32) + b2_ref[...]
    h2 = jnp.maximum(h2f, 0.0).astype(jnp.bfloat16)                      # [512, TB]

    # layer5 + layer6 (LogSoftmax over 2 classes), specialized:
    #   d = z1 - z0 ; logp0 = -softplus(d) ; logp1 = -softplus(-d)
    d = jnp.dot(w3d_ref[...], h2, preferred_element_type=jnp.float32) + b3d_ref[...]  # [1, TB]
    log1p_term = jnp.log1p(jnp.exp(-jnp.abs(d)))                         # numerically stable
    logp0 = -(jnp.maximum(d, 0.0) + log1p_term)
    logp1 = -(jnp.maximum(-d, 0.0) + log1p_term)
    o_ref[...] = jnp.concatenate([logp0, logp1], axis=0).astype(o_ref.dtype)  # [2, TB]


def _choose_tile(B, block_b):
    """Pick a lane-aligned batch tile (multiple of 128) and the padded batch."""
    b_min = _round_up(B, 128)
    tb = min(_round_up(block_b, 128), b_min)
    # If the whole batch fits in one tile, split it in two so v7x's 2 TensorCores
    # both get work via the "parallel" grid axis (no-op on v5e/v6e, 1 TC).
    if tb >= b_min and B > 128:
        tb = _round_up((B + 1) // 2, 128)
    b_pad = _round_up(B, tb)
    return tb, b_pad


def dnn_action_detect_forward(x, params, *, block_b=1024):
    """x: [B, 20] float32, params from prepare_params() -> [B, 2] float32 log-probs."""
    w1, b1, w2, b2, w3d, b3d = params
    B, F = x.shape

    tb, b_pad = _choose_tile(B, block_b)
    grid = (b_pad // tb,)

    # Transpose so batch lives on lanes; pad ragged batches (padded cols are sliced off).
    xt = x.T                                                  # [20, B]
    if b_pad != B:
        xt = jnp.pad(xt, ((0, 0), (0, b_pad - B)))

    def const_spec(shape):
        return pl.BlockSpec(shape, lambda i: (0,) * len(shape))

    flops = 2 * b_pad * (F * HIDDEN_PAD + HIDDEN_PAD * HIDDEN_PAD + HIDDEN_PAD)
    bytes_accessed = (xt.size * xt.dtype.itemsize
                      + sum(a.size * a.dtype.itemsize for a in (w1, b1, w2, b2, w3d, b3d))
                      + b_pad * 2 * 4)

    out_t = pl.pallas_call(
        _mlp_logsoftmax_kernel,
        out_shape=jax.ShapeDtypeStruct((2, b_pad), jnp.float32),
        grid=grid,
        in_specs=[
            pl.BlockSpec((F, tb), lambda i: (0, i)),          # x tile: lane-dense, streams
            const_spec(w1.shape), const_spec(b1.shape),       # weights pinned in VMEM
            const_spec(w2.shape), const_spec(b2.shape),
            const_spec(w3d.shape), const_spec(b3d.shape),
        ],
        out_specs=pl.BlockSpec((2, tb), lambda i: (0, i)),    # lane-dense, unmasked stores
        compiler_params=pltpu.CompilerParams(
            dimension_semantics=("parallel",),                # v7x: shard tiles over 2 TCs
            vmem_limit_bytes=32 * 1024 * 1024),               # headroom on v5e (16MiB default)
        cost_estimate=pl.CostEstimate(
            flops=flops, transcendentals=2 * b_pad, bytes_accessed=bytes_accessed),
    )(xt, w1, b1, w2, b2, w3d, b3d)

    return out_t[:, :B].T                                     # [B, 2]


def init_params(key):
    """Deterministic f32 init mimicking nn.Linear (PyTorch [out, in] weight layout)."""
    def linear(key, fan_in, fan_out):
        kw, kb = jax.random.split(key)
        bound = 1.0 / jnp.sqrt(jnp.float32(fan_in))
        w = jax.random.uniform(kw, (fan_out, fan_in), jnp.float32, -bound, bound)
        b = jax.random.uniform(kb, (fan_out,), jnp.float32, -bound, bound)
        return w, b

    k1, k2, k3 = jax.random.split(key, 3)
    w1, b1 = linear(k1, 20, HIDDEN)
    w2, b2 = linear(k2, HIDDEN, HIDDEN)
    w3, b3 = linear(k3, HIDDEN, 2)
    return w1, b1, w2, b2, w3, b3


def prepare_params(w1, b1, w2, b2, w3, b3):
    """One-time host-side conversion to the kernel's format:
       * keep PyTorch-native [out, in] weight layout (transposed compute),
       * zero-pad the hidden dim 400 -> 512 (padded rows/cols stay 0 through ReLU),
       * bf16 weights (halved weight DMA), f32 column biases,
       * fold the 2-class head into a single difference row d = w3[1]-w3[0]."""
    H, P = HIDDEN, HIDDEN_PAD
    f_in = w1.shape[1]

    w1p = jnp.zeros((P, f_in), jnp.bfloat16).at[:H, :].set(w1.astype(jnp.bfloat16))
    b1p = jnp.zeros((P, 1), jnp.float32).at[:H, 0].set(b1.astype(jnp.float32))
    w2p = jnp.zeros((P, P), jnp.bfloat16).at[:H, :H].set(w2.astype(jnp.bfloat16))
    b2p = jnp.zeros((P, 1), jnp.float32).at[:H, 0].set(b2.astype(jnp.float32))
    w3d = (w3[1, :] - w3[0, :]).astype(jnp.bfloat16)                     # [400]
    w3dp = jnp.zeros((1, P), jnp.bfloat16).at[0, :H].set(w3d)
    b3d = (b3[1] - b3[0]).reshape(1, 1).astype(jnp.float32)
    return w1p, b1p, w2p, b2p, w3dp, b3d


if __name__ == "__main__":
    key = jax.random.PRNGKey(0)
    k_params, k_x, k_x2 = jax.random.split(key, 3)

    raw = init_params(k_params)
    params = prepare_params(*raw)
    w1, b1, w2, b2, w3, b3 = raw
    w1p, b1p, w2p, b2p, w3dp, b3dp = params

    # --- main run (small shapes) ---
    B = 64
    x = jax.random.normal(k_x, (B, 20), jnp.float32)
    out = jax.block_until_ready(dnn_action_detect_forward(x, params))
    assert out.shape == (B, 2)

    # Reference 1: precision-matched JAX reference (same bf16 weights/activations,
    # f32 accumulation, padded hidden dim).
    xt = x.T.astype(jnp.bfloat16)
    h1 = jnp.maximum(jnp.dot(w1p, xt, preferred_element_type=jnp.float32) + b1p,
                     0.0).astype(jnp.bfloat16)
    h2 = jnp.maximum(jnp.dot(w2p, h1, preferred_element_type=jnp.float32) + b2p,
                     0.0).astype(jnp.bfloat16)
    d = jnp.dot(w3dp, h2, preferred_element_type=jnp.float32) + b3dp
    sp = jnp.log1p(jnp.exp(-jnp.abs(d)))
    ref_bf16 = jnp.concatenate([-(jnp.maximum(d, 0.0) + sp),
                                -(jnp.maximum(-d, 0.0) + sp)], axis=0).T
    assert jnp.allclose(out, ref_bf16, atol=5e-3, rtol=5e-3), \
        float(jnp.max(jnp.abs(out - ref_bf16)))

    # Reference 2: full-f32 PyTorch-equivalent forward (loose tolerance for bf16).
    h1f = jnp.maximum(x @ w1.T + b1, 0.0)
    h2f = jnp.maximum(h1f @ w2.T + b2, 0.0)
    ref_f32 = jax.nn.log_softmax(h2f @ w3.T + b3, axis=1)
    assert float(jnp.max(jnp.abs(out - ref_f32))) < 0.1

    # --- exercise batch tiling (grid > 1) with a ragged batch ---
    B2 = 300
    x2 = jax.random.normal(k_x2, (B2, 20), jnp.float32)
    out2 = jax.block_until_ready(dnn_action_detect_forward(x2, params, block_b=128))
    assert out2.shape == (B2, 2)
    h1f2 = jnp.maximum(x2 @ w1.T + b1, 0.0)
    h2f2 = jnp.maximum(h1f2 @ w2.T + b2, 0.0)
    ref2 = jax.nn.log_softmax(h2f2 @ w3.T + b3, axis=1)
    assert float(jnp.max(jnp.abs(out2 - ref2))) < 0.1

    print("KERNEL_OK")
</pallas_src>

<mosaic_0001>
module attributes {stable_mosaic.version = 11 : i64} {
  func.func @_mlp_logsoftmax_kernel(%arg0: i32, %arg1: memref<20x128xf32, #tpu.memory_space<vmem>>, %arg2: memref<512x20xbf16, #tpu.memory_space<vmem>>, %arg3: memref<512x1xf32, #tpu.memory_space<vmem>>, %arg4: memref<512x512xbf16, #tpu.memory_space<vmem>>, %arg5: memref<512x1xf32, #tpu.memory_space<vmem>>, %arg6: memref<1x512xbf16, #tpu.memory_space<vmem>>, %arg7: memref<1x1xf32, #tpu.memory_space<vmem>>, %arg8: memref<2x128xf32, #tpu.memory_space<vmem>>) attributes {dimension_semantics = [#tpu.dimension_semantics<parallel>], iteration_bounds = array<i64: 1>, scalar_prefetch = 0 : i64, scratch_operands = 0 : i64, tpu.core_type = #tpu.core_type<tc>, window_params = [{transform_indices = @transform_0, window_bounds = array<i64: 20, 128>}, {pipeline_mode = #tpu.pipeline_mode<synchronous>, transform_indices = @transform_1, window_bounds = array<i64: 512, 20>}, {pipeline_mode = #tpu.pipeline_mode<synchronous>, transform_indices = @transform_2, window_bounds = array<i64: 512, 1>}, {pipeline_mode = #tpu.pipeline_mode<synchronous>, transform_indices = @transform_3, window_bounds = array<i64: 512, 512>}, {pipeline_mode = #tpu.pipeline_mode<synchronous>, transform_indices = @transform_4, window_bounds = array<i64: 512, 1>}, {pipeline_mode = #tpu.pipeline_mode<synchronous>, transform_indices = @transform_5, window_bounds = array<i64: 1, 512>}, {pipeline_mode = #tpu.pipeline_mode<synchronous>, transform_indices = @transform_6, window_bounds = array<i64: 1, 1>}, {transform_indices = @transform_7, window_bounds = array<i64: 2, 128>}]} {
    %c0 = arith.constant 0 : index
    %c0_0 = arith.constant 0 : index
    %0 = vector.load %arg1[%c0, %c0_0] : memref<20x128xf32, #tpu.memory_space<vmem>>, vector<20x128xf32>
    %1 = arith.truncf %0 : vector<20x128xf32> to vector<20x128xbf16>
    %c0_1 = arith.constant 0 : index
    %c0_2 = arith.constant 0 : index
    %2 = vector.load %arg2[%c0_1, %c0_2] : memref<512x20xbf16, #tpu.memory_space<vmem>>, vector<512x20xbf16>
    %cst = arith.constant dense<0.000000e+00> : vector<512x128xf32>
    %3 = tpu.matmul %2, %1, %cst {dimension_numbers = #tpu.dot_dimension_numbers<[1], [0], [0], [1], [0, 0, 1, 1], [], []>} : vector<512x20xbf16>, vector<20x128xbf16>, vector<512x128xf32> -> vector<512x128xf32>
    %c0_3 = arith.constant 0 : index
    %c0_4 = arith.constant 0 : index
    %4 = vector.load %arg3[%c0_3, %c0_4] : memref<512x1xf32, #tpu.memory_space<vmem>>, vector<512x1xf32>
    %5 = vector.broadcast %4 : vector<512x1xf32> to vector<512x128xf32>
    %6 = arith.addf %3, %5 : vector<512x128xf32>
    %cst_5 = arith.constant 0.000000e+00 : f32
    %7 = vector.broadcast %cst_5 : f32 to vector<512x128xf32>
    %8 = arith.maximumf %6, %7 : vector<512x128xf32>
    %9 = arith.truncf %8 : vector<512x128xf32> to vector<512x128xbf16>
    %c0_6 = arith.constant 0 : index
    %c0_7 = arith.constant 0 : index
    %10 = vector.load %arg4[%c0_6, %c0_7] : memref<512x512xbf16, #tpu.memory_space<vmem>>, vector<512x512xbf16>
    %cst_8 = arith.constant dense<0.000000e+00> : vector<512x128xf32>
    %11 = tpu.matmul %10, %9, %cst_8 {dimension_numbers = #tpu.dot_dimension_numbers<[1], [0], [0], [1], [0, 0, 1, 1], [], []>} : vector<512x512xbf16>, vector<512x128xbf16>, vector<512x128xf32> -> vector<512x128xf32>
    %c0_9 = arith.constant 0 : index
    %c0_10 = arith.constant 0 : index
    %12 = vector.load %arg5[%c0_9, %c0_10] : memref<512x1xf32, #tpu.memory_space<vmem>>, vector<512x1xf32>
    %13 = vector.broadcast %12 : vector<512x1xf32> to vector<512x128xf32>
    %14 = arith.addf %11, %13 : vector<512x128xf32>
    %cst_11 = arith.constant 0.000000e+00 : f32
    %15 = vector.broadcast %cst_11 : f32 to vector<512x128xf32>
    %16 = arith.maximumf %14, %15 : vector<512x128xf32>
    %17 = arith.truncf %16 : vector<512x128xf32> to vector<512x128xbf16>
    %c0_12 = arith.constant 0 : index
    %c0_13 = arith.constant 0 : index
    %18 = vector.load %arg6[%c0_12, %c0_13] : memref<1x512xbf16, #tpu.memory_space<vmem>>, vector<1x512xbf16>
    %cst_14 = arith.constant dense<0.000000e+00> : vector<1x128xf32>
    %19 = tpu.matmul %18, %17, %cst_14 {dimension_numbers = #tpu.dot_dimension_numbers<[1], [0], [0], [1], [0, 0, 1, 1], [], []>} : vector<1x512xbf16>, vector<512x128xbf16>, vector<1x128xf32> -> vector<1x128xf32>
    %c0_15 = arith.constant 0 : index
    %c0_16 = arith.constant 0 : index
    %20 = vector.load %arg7[%c0_15, %c0_16] : memref<1x1xf32, #tpu.memory_space<vmem>>, vector<1x1xf32>
    %21 = vector.broadcast %20 : vector<1x1xf32> to vector<1x128xf32>
    %22 = arith.addf %19, %21 : vector<1x128xf32>
    %23 = math.absf %22 : vector<1x128xf32>
    %cst_17 = arith.constant 0.000000e+00 : f32
    %24 = vector.broadcast %cst_17 : f32 to vector<1x128xf32>
    %25 = arith.subf %24, %23 : vector<1x128xf32>
    %26 = math.exp %25 : vector<1x128xf32>
    %27 = math.log1p %26 : vector<1x128xf32>
    %cst_18 = arith.constant 0.000000e+00 : f32
    %28 = vector.broadcast %cst_18 : f32 to vector<1x128xf32>
    %29 = arith.maximumf %22, %28 : vector<1x128xf32>
    %30 = arith.addf %29, %27 : vector<1x128xf32>
    %cst_19 = arith.constant 0.000000e+00 : f32
    %31 = vector.broadcast %cst_19 : f32 to vector<1x128xf32>
    %32 = arith.subf %31, %30 : vector<1x128xf32>
    %cst_20 = arith.constant 0.000000e+00 : f32
    %33 = vector.broadcast %cst_20 : f32 to vector<1x128xf32>
    %34 = arith.subf %33, %22 : vector<1x128xf32>
    %cst_21 = arith.constant 0.000000e+00 : f32
    %35 = vector.broadcast %cst_21 : f32 to vector<1x128xf32>
    %36 = arith.maximumf %34, %35 : vector<1x128xf32>
    %37 = arith.addf %36, %27 : vector<1x128xf32>
    %cst_22 = arith.constant 0.000000e+00 : f32
    %38 = vector.broadcast %cst_22 : f32 to vector<1x128xf32>
    %39 = arith.subf %38, %37 : vector<1x128xf32>
    %40 = tpu.concatenate %32, %39 in 0 : vector<1x128xf32>, vector<1x128xf32> -> vector<2x128xf32>
    %c0_23 = arith.constant 0 : index
    %c0_24 = arith.constant 0 : index
    %41 = vector.load %arg8[%c0_23, %c0_24] : memref<2x128xf32, #tpu.memory_space<vmem>>, vector<2x128xf32>
    tpu.vector_store %arg8[%c0_23, %c0_24], %40 {strides = array<i32>} : memref<2x128xf32, #tpu.memory_space<vmem>>, vector<2x128xf32>,
    return
  }
  func.func @transform_0(%arg0: i32) -> (i32, i32) {
    %c0_i32 = arith.constant 0 : i32
    %c0_i32_0 = arith.constant 0 : i32
    return %c0_i32, %arg0 : i32, i32
  }
  func.func @transform_1(%arg0: i32) -> (i32, i32) {
    %c0_i32 = arith.constant 0 : i32
    %c0_i32_0 = arith.constant 0 : i32
    %c0_i32_1 = arith.constant 0 : i32
    return %c0_i32, %c0_i32_0 : i32, i32
  }
  func.func @transform_2(%arg0: i32) -> (i32, i32) {
    %c0_i32 = arith.constant 0 : i32
    %c0_i32_0 = arith.constant 0 : i32
    %c0_i32_1 = arith.constant 0 : i32
    return %c0_i32, %c0_i32_0 : i32, i32
  }
  func.func @transform_3(%arg0: i32) -> (i32, i32) {
    %c0_i32 = arith.constant 0 : i32
    %c0_i32_0 = arith.constant 0 : i32
    %c0_i32_1 = arith.constant 0 : i32
    return %c0_i32, %c0_i32_0 : i32, i32
  }
  func.func @transform_4(%arg0: i32) -> (i32, i32) {
    %c0_i32 = arith.constant 0 : i32
    %c0_i32_0 = arith.constant 0 : i32
    %c0_i32_1 = arith.constant 0 : i32
    return %c0_i32, %c0_i32_0 : i32, i32
  }
  func.func @transform_5(%arg0: i32) -> (i32, i32) {
    %c0_i32 = arith.constant 0 : i32
    %c0_i32_0 = arith.constant 0 : i32
    %c0_i32_1 = arith.constant 0 : i32
    return %c0_i32, %c0_i32_0 : i32, i32
  }
  func.func @transform_6(%arg0: i32) -> (i32, i32) {
    %c0_i32 = arith.constant 0 : i32
    %c0_i32_0 = arith.constant 0 : i32
    %c0_i32_1 = arith.constant 0 : i32
    return %c0_i32, %c0_i32_0 : i32, i32
  }
  func.func @transform_7(%arg0: i32) -> (i32, i32) {
    %c0_i32 = arith.constant 0 : i32
    %c0_i32_0 = arith.constant 0 : i32
    return %c0_i32, %arg0 : i32, i32
  }
}

</mosaic_0001>

<llo_original>
// kernel: tpu_custom_call.1
$region0: #{tpu_custom_call.1}
  #allocation0 [shape = 'u32[]', space=smem, size = 0x4, offset = 0x4, fixed_abs, tag = 'smem constant byte address 0x4 - core index']
  #allocation1 [shape = 'u32[144,128]{1,0:T(1,128)}', space=vmem, size = 0x12000, scoped, tag = 'internal scratch']
  #allocation2 [shape = 'f32[1,1]{1,0:T(1,128)S(1)}', space=vmem, size = 0x200, scoped, tag = 'scoped memory for tpu_custom_call.1']
  %s0 = inlined_call_operand.vmem [shape: f32[20,128], index: 0, kind: input, shape index: {}]
  %s1 = inlined_call_operand.vmem [shape: bf16[512,20], index: 1, kind: input, shape index: {}]
  %s2 = inlined_call_operand.vmem [shape: f32[512,1], index: 2, kind: input, shape index: {}]
  %s3 = inlined_call_operand.vmem [shape: bf16[512,512], index: 3, kind: input, shape index: {}]
  %s4 = inlined_call_operand.vmem [shape: f32[512,1], index: 4, kind: input, shape index: {}]
  %s5 = inlined_call_operand.vmem [shape: bf16[1,512], index: 5, kind: input, shape index: {}]
  %s6 = inlined_call_operand.<no memory space> [shape: f32[1,1], index: 6, kind: input, shape index: {}]
  %s7 = inlined_call_operand.hbm [shape: f32[2,128], index: 7, kind: output, shape index: {}]
  %s8 = sld [smem:[#allocation0]]
  $region38: #{tpu_custom_call.1} parent=0
    _
  %s10 = ssub.s32 1, %s8
  %s11 = scalar_select 0, %s10, %s8
  %v12 = vstv %s6
  %13 = vst [vmem:[#allocation2] sm:$0x1] %v12
  $region1: #{tpu_custom_call.1} parent=0
    #allocation3 [shape = 'u8[1024]{0}', space=vmem, size = 0x400, scoped, tag = 'output window, operand 0, single buffered']
    #allocation4 [shape = 's32[1]{0}', space=sflag, size = 0x4, scoped, tag = 'scoped memory for tpu_custom_call.1']
    %14 = vsyncpa [#allocation4], 0
    // Predicated region
    $region2: #{tpu_custom_call.1} parent=1 // pred_check
      _
    $region3: #{tpu_custom_call.1} parent=1 // pred_check_branch
      %16 = sbr.rel (0) target = $region5
    $region4: #{tpu_custom_call.1} parent=1 // pred_region
      _
    $region5: #{tpu_custom_call.1} parent=1 // pred_fallthru
      _
    // Predicated region
    $region6: #{tpu_custom_call.1} parent=1 // pred_check
      _
    $region7: #{tpu_custom_call.1} parent=1 // pred_check_branch
      %18 = sbr.rel (0) target = $region9
    $region8: #{tpu_custom_call.1} parent=1 // pred_region
      _
    $region9: #{tpu_custom_call.1} parent=1 // pred_fallthru
      _
    // Predicated region
    $region10: #{tpu_custom_call.1} parent=1 // pred_check
      _
    $region11: #{tpu_custom_call.1} parent=1 // pred_check_branch
      %20 = sbr.rel (0) target = $region13
    $region12: #{tpu_custom_call.1} parent=1 // pred_region
      _
    $region13: #{tpu_custom_call.1} parent=1 // pred_fallthru
      _
    // Predicated region
    $region14: #{tpu_custom_call.1} parent=1 // pred_check
      _
    $region15: #{tpu_custom_call.1} parent=1 // pred_check_branch
      %22 = sbr.rel (0) target = $region17
    $region16: #{tpu_custom_call.1} parent=1 // pred_region
      _
    $region17: #{tpu_custom_call.1} parent=1 // pred_fallthru
      _
    // Predicated region
    $region18: #{tpu_custom_call.1} parent=1 // pred_check
      _
    $region19: #{tpu_custom_call.1} parent=1 // pred_check_branch
      %24 = sbr.rel (0) target = $region21
    $region20: #{tpu_custom_call.1} parent=1 // pred_region
      _
    $region21: #{tpu_custom_call.1} parent=1 // pred_fallthru
      _
    // Predicated region
    $region22: #{tpu_custom_call.1} parent=1 // pred_check
      _
    $region23: #{tpu_custom_call.1} parent=1 // pred_check_branch
      %26 = sbr.rel (0) target = $region25
    $region24: #{tpu_custom_call.1} parent=1 // pred_region
      _
    $region25: #{tpu_custom_call.1} parent=1 // pred_fallthru
      _
    // Predicated region
    $region26: #{tpu_custom_call.1} parent=1 // pred_check
      _
    $region27: #{tpu_custom_call.1} parent=1 // pred_check_branch
      %28 = sbr.rel (0) target = $region29
    $region28: #{tpu_custom_call.1} parent=1 // pred_region
      _
    $region29: #{tpu_custom_call.1} parent=1 // pred_fallthru
      _
    %v30 = vld [vmem:[%s0] sm:$0xff]
    %v31 = vld [vmem:[%s0 + $0x8] sm:$0xff]
    %v32 = vld [vmem:[%s0 + $0x10] sm:$0xf]
    %v33 = vpack.c.bf16 %v31, %v30
    %v34 = vpack.c.bf16 %v32, %v32
    %v35 = vld [vmem:[%s1] sm:$0xf]
    %v36 = vld [vmem:[%s1 + $0x4] sm:$0xf]
    %v37 = vld [vmem:[%s1 + $0x8] sm:$0xf]
    %v38 = vld [vmem:[%s1 + $0xc] sm:$0xf]
    %v39 = vld [vmem:[%s1 + $0x10] sm:$0xf]
    %v40 = vld [vmem:[%s1 + $0x14] sm:$0xf]
    %v41 = vld [vmem:[%s1 + $0x18] sm:$0xf]
    %v42 = vld [vmem:[%s1 + $0x1c] sm:$0xf]
    %v43 = vld [vmem:[%s1 + $0x20] sm:$0xf]
    %v44 = vld [vmem:[%s1 + $0x24] sm:$0xf]
    %v45 = vld [vmem:[%s1 + $0x28] sm:$0xf]
    %v46 = vld [vmem:[%s1 + $0x2c] sm:$0xf]
    %v47 = vld [vmem:[%s1 + $0x30] sm:$0xf]
    %v48 = vld [vmem:[%s1 + $0x34] sm:$0xf]
    %v49 = vld [vmem:[%s1 + $0x38] sm:$0xf]
    %v50 = vld [vmem:[%s1 + $0x3c] sm:$0xf]
    %v51 = vld [vmem:[%s1 + $0x40] sm:$0xf]
    %v52 = vld [vmem:[%s1 + $0x44] sm:$0xf]
    %v53 = vld [vmem:[%s1 + $0x48] sm:$0xf]
    %v54 = vld [vmem:[%s1 + $0x4c] sm:$0xf]
    %v55 = vld [vmem:[%s1 + $0x50] sm:$0xf]
    %v56 = vld [vmem:[%s1 + $0x54] sm:$0xf]
    %v57 = vld [vmem:[%s1 + $0x58] sm:$0xf]
    %v58 = vld [vmem:[%s1 + $0x5c] sm:$0xf]
    %v59 = vld [vmem:[%s1 + $0x60] sm:$0xf]
    %v60 = vld [vmem:[%s1 + $0x64] sm:$0xf]
    %v61 = vld [vmem:[%s1 + $0x68] sm:$0xf]
    %v62 = vld [vmem:[%s1 + $0x6c] sm:$0xf]
    %v63 = vld [vmem:[%s1 + $0x70] sm:$0xf]
    %v64 = vld [vmem:[%s1 + $0x74] sm:$0xf]
    %v65 = vld [vmem:[%s1 + $0x78] sm:$0xf]
    %v66 = vld [vmem:[%s1 + $0x7c] sm:$0xf]
    %v67 = vld [vmem:[%s1 + $0x80] sm:$0xf]
    %v68 = vld [vmem:[%s1 + $0x84] sm:$0xf]
    %v69 = vld [vmem:[%s1 + $0x88] sm:$0xf]
    %v70 = vld [vmem:[%s1 + $0x8c] sm:$0xf]
    %v71 = vld [vmem:[%s1 + $0x90] sm:$0xf]
    %v72 = vld [vmem:[%s1 + $0x94] sm:$0xf]
    %v73 = vld [vmem:[%s1 + $0x98] sm:$0xf]
    %v74 = vld [vmem:[%s1 + $0x9c] sm:$0xf]
    %v75 = vld [vmem:[%s1 + $0xa0] sm:$0xf]
    %v76 = vld [vmem:[%s1 + $0xa4] sm:$0xf]
    %v77 = vld [vmem:[%s1 + $0xa8] sm:$0xf]
    %v78 = vld [vmem:[%s1 + $0xac] sm:$0xf]
    %v79 = vld [vmem:[%s1 + $0xb0] sm:$0xf]
    %v80 = vld [vmem:[%s1 + $0xb4] sm:$0xf]
    %v81 = vld [vmem:[%s1 + $0xb8] sm:$0xf]
    %v82 = vld [vmem:[%s1 + $0xbc] sm:$0xf]
    %v83 = vld [vmem:[%s1 + $0xc0] sm:$0xf]
    %v84 = vld [vmem:[%s1 + $0xc4] sm:$0xf]
    %v85 = vld [vmem:[%s1 + $0xc8] sm:$0xf]
    %v86 = vld [vmem:[%s1 + $0xcc] sm:$0xf]
    %v87 = vld [vmem:[%s1 + $0xd0] sm:$0xf]
    %v88 = vld [vmem:[%s1 + $0xd4] sm:$0xf]
    %v89 = vld [vmem:[%s1 + $0xd8] sm:$0xf]
    %v90 = vld [vmem:[%s1 + $0xdc] sm:$0xf]
    %v91 = vld [vmem:[%s1 + $0xe0] sm:$0xf]
    %v92 = vld [vmem:[%s1 + $0xe4] sm:$0xf]
    %v93 = vld [vmem:[%s1 + $0xe8] sm:$0xf]
    %v94 = vld [vmem:[%s1 + $0xec] sm:$0xf]
    %v95 = vld [vmem:[%s1 + $0xf0] sm:$0xf]
    %v96 = vld [vmem:[%s1 + $0xf4] sm:$0xf]
    %v97 = vld [vmem:[%s1 + $0xf8] sm:$0xf]
    %v98 = vld [vmem:[%s1 + $0xfc] sm:$0xf]
    %v99 = vld [vmem:[%s2] sm:$0xff]
    %v100 = vld [vmem:[%s2 + $0x8] sm:$0xff]
    %v101 = vld [vmem:[%s2 + $0x10] sm:$0xff]
    %v102 = vld [vmem:[%s2 + $0x18] sm:$0xff]
    %v103 = vld [vmem:[%s2 + $0x20] sm:$0xff]
    %v104 = vld [vmem:[%s2 + $0x28] sm:$0xff]
    %v105 = vld [vmem:[%s2 + $0x30] sm:$0xff]
    %v106 = vld [vmem:[%s2 + $0x38] sm:$0xff]
    %v107 = vld [vmem:[%s2 + $0x40] sm:$0xff]
    %v108 = vld [vmem:[%s2 + $0x48] sm:$0xff]
    %v109 = vld [vmem:[%s2 + $0x50] sm:$0xff]
    %v110 = vld [vmem:[%s2 + $0x58] sm:$0xff]
    %v111 = vld [vmem:[%s2 + $0x60] sm:$0xff]
    %v112 = vld [vmem:[%s2 + $0x68] sm:$0xff]
    %v113 = vld [vmem:[%s2 + $0x70] sm:$0xff]
    %v114 = vld [vmem:[%s2 + $0x78] sm:$0xff]
    %v115 = vld [vmem:[%s2 + $0x80] sm:$0xff]
    %v116 = vld [vmem:[%s2 + $0x88] sm:$0xff]
    %v117 = vld [vmem:[%s2 + $0x90] sm:$0xff]
    %v118 = vld [vmem:[%s2 + $0x98] sm:$0xff]
    %v119 = vld [vmem:[%s2 + $0xa0] sm:$0xff]
    %v120 = vld [vmem:[%s2 + $0xa8] sm:$0xff]
    %v121 = vld [vmem:[%s2 + $0xb0] sm:$0xff]
    %v122 = vld [vmem:[%s2 + $0xb8] sm:$0xff]
    %v123 = vld [vmem:[%s2 + $0xc0] sm:$0xff]
    %v124 = vld [vmem:[%s2 + $0xc8] sm:$0xff]
    %v125 = vld [vmem:[%s2 + $0xd0] sm:$0xff]
    %v126 = vld [vmem:[%s2 + $0xd8] sm:$0xff]
    %v127 = vld [vmem:[%s2 + $0xe0] sm:$0xff]
    %v128 = vld [vmem:[%s2 + $0xe8] sm:$0xff]
    %v129 = vld [vmem:[%s2 + $0xf0] sm:$0xff]
    %v130 = vld [vmem:[%s2 + $0xf8] sm:$0xff]
    %v131 = vld [vmem:[%s2 + $0x100] sm:$0xff]
    %v132 = vld [vmem:[%s2 + $0x108] sm:$0xff]
    %v133 = vld [vmem:[%s2 + $0x110] sm:$0xff]
    %v134 = vld [vmem:[%s2 + $0x118] sm:$0xff]
    %v135 = vld [vmem:[%s2 + $0x120] sm:$0xff]
    %v136 = vld [vmem:[%s2 + $0x128] sm:$0xff]
    %v137 = vld [vmem:[%s2 + $0x130] sm:$0xff]
    %v138 = vld [vmem:[%s2 + $0x138] sm:$0xff]
    %v139 = vld [vmem:[%s2 + $0x140] sm:$0xff]
    %v140 = vld [vmem:[%s2 + $0x148] sm:$0xff]
    %v141 = vld [vmem:[%s2 + $0x150] sm:$0xff]
    %v142 = vld [vmem:[%s2 + $0x158] sm:$0xff]
    %v143 = vld [vmem:[%s2 + $0x160] sm:$0xff]
    %v144 = vld [vmem:[%s2 + $0x168] sm:$0xff]
    %v145 = vld [vmem:[%s2 + $0x170] sm:$0xff]
    %v146 = vld [vmem:[%s2 + $0x178] sm:$0xff]
    %v147 = vld [vmem:[%s2 + $0x180] sm:$0xff]
    %v148 = vld [vmem:[%s2 + $0x188] sm:$0xff]
    %v149 = vld [vmem:[%s2 + $0x190] sm:$0xff]
    %v150 = vld [vmem:[%s2 + $0x198] sm:$0xff]
    %v151 = vld [vmem:[%s2 + $0x1a0] sm:$0xff]
    %v152 = vld [vmem:[%s2 + $0x1a8] sm:$0xff]
    %v153 = vld [vmem:[%s2 + $0x1b0] sm:$0xff]
    %v154 = vld [vmem:[%s2 + $0x1b8] sm:$0xff]
    %v155 = vld [vmem:[%s2 + $0x1c0] sm:$0xff]
    %v156 = vld [vmem:[%s2 + $0x1c8] sm:$0xff]
    %v157 = vld [vmem:[%s2 + $0x1d0] sm:$0xff]
    %v158 = vld [vmem:[%s2 + $0x1d8] sm:$0xff]
    %v159 = vld [vmem:[%s2 + $0x1e0] sm:$0xff]
    %v160 = vld [vmem:[%s2 + $0x1e8] sm:$0xff]
    %v161 = vld [vmem:[%s2 + $0x1f0] sm:$0xff]
    %v162 = vld [vmem:[%s2 + $0x1f8] sm:$0xff]
    %164 = vset.pattern.permute.xlu0 0
    %165 = vperm.xlu0 %164, %v99
    %v166 = vpop.permute.xlu0 %165
    %169 = vset.pattern.permute.xlu0 0
    %170 = vperm.xlu0 %169, %v100
    %v171 = vpop.permute.xlu0 %170
    %174 = vset.pattern.permute.xlu0 0
    %175 = vperm.xlu0 %174, %v101
    %v176 = vpop.permute.xlu0 %175
    %179 = vset.pattern.permute.xlu0 0
    %180 = vperm.xlu0 %179, %v102
    %v181 = vpop.permute.xlu0 %180
    %184 = vset.pattern.permute.xlu0 0
    %185 = vperm.xlu0 %184, %v103
    %v186 = vpop.permute.xlu0 %185
    %189 = vset.pattern.permute.xlu0 0
    %190 = vperm.xlu0 %189, %v104
    %v191 = vpop.permute.xlu0 %190
    %194 = vset.pattern.permute.xlu0 0
    %195 = vperm.xlu0 %194, %v105
    %v196 = vpop.permute.xlu0 %195
    %199 = vset.pattern.permute.xlu0 0
    %200 = vperm.xlu0 %199, %v106
    %v201 = vpop.permute.xlu0 %200
    %204 = vset.pattern.permute.xlu0 0
    %205 = vperm.xlu0 %204, %v107
    %v206 = vpop.permute.xlu0 %205
    %209 = vset.pattern.permute.xlu0 0
    %210 = vperm.xlu0 %209, %v108
    %v211 = vpop.permute.xlu0 %210
    %214 = vset.pattern.permute.xlu0 0
    %215 = vperm.xlu0 %214, %v109
    %v216 = vpop.permute.xlu0 %215
    %219 = vset.pattern.permute.xlu0 0
    %220 = vperm.xlu0 %219, %v110
    %v221 = vpop.permute.xlu0 %220
    %224 = vset.pattern.permute.xlu0 0
    %225 = vperm.xlu0 %224, %v111
    %v226 = vpop.permute.xlu0 %225
    %229 = vset.pattern.permute.xlu0 0
    %230 = vperm.xlu0 %229, %v112
    %v231 = vpop.permute.xlu0 %230
    %234 = vset.pattern.permute.xlu0 0
    %235 = vperm.xlu0 %234, %v113
    %v236 = vpop.permute.xlu0 %235
    %239 = vset.pattern.permute.xlu0 0
    %240 = vperm.xlu0 %239, %v114
    %v241 = vpop.permute.xlu0 %240
    %244 = vset.pattern.permute.xlu0 0
    %245 = vperm.xlu0 %244, %v115
    %v246 = vpop.permute.xlu0 %245
    %249 = vset.pattern.permute.xlu0 0
    %250 = vperm.xlu0 %249, %v116
    %v251 = vpop.permute.xlu0 %250
    %254 = vset.pattern.permute.xlu0 0
    %255 = vperm.xlu0 %254, %v117
    %v256 = vpop.permute.xlu0 %255
    %259 = vset.pattern.permute.xlu0 0
    %260 = vperm.xlu0 %259, %v118
    %v261 = vpop.permute.xlu0 %260
    %264 = vset.pattern.permute.xlu0 0
    %265 = vperm.xlu0 %264, %v119
    %v266 = vpop.permute.xlu0 %265
    %269 = vset.pattern.permute.xlu0 0
    %270 = vperm.xlu0 %269, %v120
    %v271 = vpop.permute.xlu0 %270
    %274 = vset.pattern.permute.xlu0 0
    %275 = vperm.xlu0 %274, %v121
    %v276 = vpop.permute.xlu0 %275
    %279 = vset.pattern.permute.xlu0 0
    %280 = vperm.xlu0 %279, %v122
    %v281 = vpop.permute.xlu0 %280
    %284 = vset.pattern.permute.xlu0 0
    %285 = vperm.xlu0 %284, %v123
    %v286 = vpop.permute.xlu0 %285
    %289 = vset.pattern.permute.xlu0 0
    %290 = vperm.xlu0 %289, %v124
    %v291 = vpop.permute.xlu0 %290
    %294 = vset.pattern.permute.xlu0 0
    %295 = vperm.xlu0 %294, %v125
    %v296 = vpop.permute.xlu0 %295
    %299 = vset.pattern.permute.xlu0 0
    %300 = vperm.xlu0 %299, %v126
    %v301 = vpop.permute.xlu0 %300
    %304 = vset.pattern.permute.xlu0 0
    %305 = vperm.xlu0 %304, %v127
    %v306 = vpop.permute.xlu0 %305
    %309 = vset.pattern.permute.xlu0 0
    %310 = vperm.xlu0 %309, %v128
    %v311 = vpop.permute.xlu0 %310
    %314 = vset.pattern.permute.xlu0 0
    %315 = vperm.xlu0 %314, %v129
    %v316 = vpop.permute.xlu0 %315
    %319 = vset.pattern.permute.xlu0 0
    %320 = vperm.xlu0 %319, %v130
    %v321 = vpop.permute.xlu0 %320
    %324 = vset.pattern.permute.xlu0 0
    %325 = vperm.xlu0 %324, %v131
    %v326 = vpop.permute.xlu0 %325
    %329 = vset.pattern.permute.xlu0 0
    %330 = vperm.xlu0 %329, %v132
    %v331 = vpop.permute.xlu0 %330
    %334 = vset.pattern.permute.xlu0 0
    %335 = vperm.xlu0 %334, %v133
    %v336 = vpop.permute.xlu0 %335
    %339 = vset.pattern.permute.xlu0 0
    %340 = vperm.xlu0 %339, %v134
    %v341 = vpop.permute.xlu0 %340
    %344 = vset.pattern.permute.xlu0 0
    %345 = vperm.xlu0 %344, %v135
    %v346 = vpop.permute.xlu0 %345
    %349 = vset.pattern.permute.xlu0 0
    %350 = vperm.xlu0 %349, %v136
    %v351 = vpop.permute.xlu0 %350
    %354 = vset.pattern.permute.xlu0 0
    %355 = vperm.xlu0 %354, %v137
    %v356 = vpop.permute.xlu0 %355
    %359 = vset.pattern.permute.xlu0 0
    %360 = vperm.xlu0 %359, %v138
    %v361 = vpop.permute.xlu0 %360
    %364 = vset.pattern.permute.xlu0 0
    %365 = vperm.xlu0 %364, %v139
    %v366 = vpop.permute.xlu0 %365
    %369 = vset.pattern.permute.xlu0 0
    %370 = vperm.xlu0 %369, %v140
    %v371 = vpop.permute.xlu0 %370
    %374 = vset.pattern.permute.xlu0 0
    %375 = vperm.xlu0 %374, %v141
    %v376 = vpop.permute.xlu0 %375
    %379 = vset.pattern.permute.xlu0 0
    %380 = vperm.xlu0 %379, %v142
    %v381 = vpop.permute.xlu0 %380
    %384 = vset.pattern.permute.xlu0 0
    %385 = vperm.xlu0 %384, %v143
    %v386 = vpop.permute.xlu0 %385
    %389 = vset.pattern.permute.xlu0 0
    %390 = vperm.xlu0 %389, %v144
    %v391 = vpop.permute.xlu0 %390
    %394 = vset.pattern.permute.xlu0 0
    %395 = vperm.xlu0 %394, %v145
    %v396 = vpop.permute.xlu0 %395
    %399 = vset.pattern.permute.xlu0 0
    %400 = vperm.xlu0 %399, %v146
    %v401 = vpop.permute.xlu0 %400
    %404 = vset.pattern.permute.xlu0 0
    %405 = vperm.xlu0 %404, %v147
    %v406 = vpop.permute.xlu0 %405
    %409 = vset.pattern.permute.xlu0 0
    %410 = vperm.xlu0 %409, %v148
    %v411 = vpop.permute.xlu0 %410
    %414 = vset.pattern.permute.xlu0 0
    %415 = vperm.xlu0 %414, %v149
    %v416 = vpop.permute.xlu0 %415
    %419 = vset.pattern.permute.xlu0 0
    %420 = vperm.xlu0 %419, %v150
    %v421 = vpop.permute.xlu0 %420
    %424 = vset.pattern.permute.xlu0 0
    %425 = vperm.xlu0 %424, %v151
    %v426 = vpop.permute.xlu0 %425
    %429 = vset.pattern.permute.xlu0 0
    %430 = vperm.xlu0 %429, %v152
    %v431 = vpop.permute.xlu0 %430
    %434 = vset.pattern.permute.xlu0 0
    %435 = vperm.xlu0 %434, %v153
    %v436 = vpop.permute.xlu0 %435
    %439 = vset.pattern.permute.xlu0 0
    %440 = vperm.xlu0 %439, %v154
    %v441 = vpop.permute.xlu0 %440
    %444 = vset.pattern.permute.xlu0 0
    %445 = vperm.xlu0 %444, %v155
    %v446 = vpop.permute.xlu0 %445
    %449 = vset.pattern.permute.xlu0 0
    %450 = vperm.xlu0 %449, %v156
    %v451 = vpop.permute.xlu0 %450
    %454 = vset.pattern.permute.xlu0 0
    %455 = vperm.xlu0 %454, %v157
    %v456 = vpop.permute.xlu0 %455
    %459 = vset.pattern.permute.xlu0 0
    %460 = vperm.xlu0 %459, %v158
    %v461 = vpop.permute.xlu0 %460
    %464 = vset.pattern.permute.xlu0 0
    %465 = vperm.xlu0 %464, %v159
    %v466 = vpop.permute.xlu0 %465
    %469 = vset.pattern.permute.xlu0 0
    %470 = vperm.xlu0 %469, %v160
    %v471 = vpop.permute.xlu0 %470
    %474 = vset.pattern.permute.xlu0 0
    %475 = vperm.xlu0 %474, %v161
    %v476 = vpop.permute.xlu0 %475
    %479 = vset.pattern.permute.xlu0 0
    %480 = vperm.xlu0 %479, %v162
    %v481 = vpop.permute.xlu0 %480
    %v547 = vunpack.c.l.b16 %v35
    %v548 = vunpack.c.l.b16 %v36
    %v549 = vunpack.c.l.b16 %v37
    %v550 = vunpack.c.l.b16 %v38
    %v551 = vunpack.c.l.b16 %v39
    %v552 = vunpack.c.l.b16 %v40
    %v553 = vunpack.c.l.b16 %v41
    %v554 = vunpack.c.l.b16 %v42
    %v555 = vunpack.c.l.b16 %v43
    %v556 = vunpack.c.l.b16 %v44
    %v557 = vunpack.c.l.b16 %v45
    %v558 = vunpack.c.l.b16 %v46
    %v559 = vunpack.c.l.b16 %v47
    %v560 = vunpack.c.l.b16 %v48
    %v561 = vunpack.c.l.b16 %v49
    %v562 = vunpack.c.l.b16 %v50
    %v563 = vunpack.c.l.b16 %v51
    %v564 = vunpack.c.l.b16 %v52
    %v565 = vunpack.c.l.b16 %v53
    %v566 = vunpack.c.l.b16 %v54
    %v567 = vunpack.c.l.b16 %v55
    %v568 = vunpack.c.l.b16 %v56
    %v569 = vunpack.c.l.b16 %v57
    %v570 = vunpack.c.l.b16 %v58
    %v571 = vunpack.c.l.b16 %v59
    %v572 = vunpack.c.l.b16 %v60
    %v573 = vunpack.c.l.b16 %v61
    %v574 = vunpack.c.l.b16 %v62
    %v575 = vunpack.c.l.b16 %v63
    %v576 = vunpack.c.l.b16 %v64
    %v577 = vunpack.c.l.b16 %v65
    %v578 = vunpack.c.l.b16 %v66
    %v579 = vunpack.c.l.b16 %v67
    %v580 = vunpack.c.l.b16 %v68
    %v581 = vunpack.c.l.b16 %v69
    %v582 = vunpack.c.l.b16 %v70
    %v583 = vunpack.c.l.b16 %v71
    %v584 = vunpack.c.l.b16 %v72
    %v585 = vunpack.c.l.b16 %v73
    %v586 = vunpack.c.l.b16 %v74
    %v587 = vunpack.c.l.b16 %v75
    %v588 = vunpack.c.l.b16 %v76
    %v589 = vunpack.c.l.b16 %v77
    %v590 = vunpack.c.l.b16 %v78
    %v591 = vunpack.c.l.b16 %v79
    %v592 = vunpack.c.l.b16 %v80
    %v593 = vunpack.c.l.b16 %v81
    %v594 = vunpack.c.l.b16 %v82
    %v595 = vunpack.c.l.b16 %v83
    %v596 = vunpack.c.l.b16 %v84
    %v597 = vunpack.c.l.b16 %v85
    %v598 = vunpack.c.l.b16 %v86
    %v599 = vunpack.c.l.b16 %v87
    %v600 = vunpack.c.l.b16 %v88
    %v601 = vunpack.c.l.b16 %v89
    %v602 = vunpack.c.l.b16 %v90
    %v603 = vunpack.c.l.b16 %v91
    %v604 = vunpack.c.l.b16 %v92
    %v605 = vunpack.c.l.b16 %v93
    %v606 = vunpack.c.l.b16 %v94
    %v607 = vunpack.c.l.b16 %v95
    %v608 = vunpack.c.l.b16 %v96
    %v609 = vunpack.c.l.b16 %v97
    %v610 = vunpack.c.l.b16 %v98
    %v611 = vpack.c.b16 %v548, %v547
    %v612 = vpack.c.b16 %v550, %v549
    %v613 = vpack.c.b16 %v552, %v551
    %v614 = vpack.c.b16 %v554, %v553
    %v615 = vpack.c.b16 %v556, %v555
    %v616 = vpack.c.b16 %v558, %v557
    %v617 = vpack.c.b16 %v560, %v559
    %v618 = vpack.c.b16 %v562, %v561
    %v619 = vpack.c.b16 %v564, %v563
    %v620 = vpack.c.b16 %v566, %v565
    %v621 = vpack.c.b16 %v568, %v567
    %v622 = vpack.c.b16 %v570, %v569
    %v623 = vpack.c.b16 %v572, %v571
    %v624 = vpack.c.b16 %v574, %v573
    %v625 = vpack.c.b16 %v576, %v575
    %v626 = vpack.c.b16 %v578, %v577
    %v627 = vpack.c.b16 %v580, %v579
    %v628 = vpack.c.b16 %v582, %v581
    %v629 = vpack.c.b16 %v584, %v583
    %v630 = vpack.c.b16 %v586, %v585
    %v631 = vpack.c.b16 %v588, %v587
    %v632 = vpack.c.b16 %v590, %v589
    %v633 = vpack.c.b16 %v592, %v591
    %v634 = vpack.c.b16 %v594, %v593
    %v635 = vpack.c.b16 %v596, %v595
    %v636 = vpack.c.b16 %v598, %v597
    %v637 = vpack.c.b16 %v600, %v599
    %v638 = vpack.c.b16 %v602, %v601
    %v639 = vpack.c.b16 %v604, %v603
    %v640 = vpack.c.b16 %v606, %v605
    %v641 = vpack.c.b16 %v608, %v607
    %v642 = vpack.c.b16 %v610, %v609
    %vm643 = vcmask 162816
    %v645 = vsel %vm643, %v611, 0
    %v648 = vsel %vm643, %v612, 0
    %v651 = vsel %vm643, %v613, 0
    %v654 = vsel %vm643, %v614, 0
    %v657 = vsel %vm643, %v615, 0
    %v660 = vsel %vm643, %v616, 0
    %v663 = vsel %vm643, %v617, 0
    %v666 = vsel %vm643, %v618, 0
    %v669 = vsel %vm643, %v619, 0
    %v672 = vsel %vm643, %v620, 0
    %v675 = vsel %vm643, %v621, 0
    %v678 = vsel %vm643, %v622, 0
    %v681 = vsel %vm643, %v623, 0
    %v684 = vsel %vm643, %v624, 0
    %v687 = vsel %vm643, %v625, 0
    %v690 = vsel %vm643, %v626, 0
    %v693 = vsel %vm643, %v627, 0
    %v696 = vsel %vm643, %v628, 0
    %v699 = vsel %vm643, %v629, 0
    %v702 = vsel %vm643, %v630, 0
    %v705 = vsel %vm643, %v631, 0
    %v708 = vsel %vm643, %v632, 0
    %v711 = vsel %vm643, %v633, 0
    %v714 = vsel %vm643, %v634, 0
    %v717 = vsel %vm643, %v635, 0
    %v720 = vsel %vm643, %v636, 0
    %v723 = vsel %vm643, %v637, 0
    %v726 = vsel %vm643, %v638, 0
    %v729 = vsel %vm643, %v639, 0
    %v732 = vsel %vm643, %v640, 0
    %v735 = vsel %vm643, %v641, 0
    %v738 = vsel %vm643, %v642, 0
    %vm740 = vcmask 1041408
    %v742 = vsel %vm740, %v34, 0
    %744 = vmatprep.subr.bf16.mxu0 0
    %745 = vmatpush1.bf16.msra.mxu0 0
    %746 = vmatprep.subr.bf16.mxu0 0
    %747 = vmatpush1.bf16.msra.mxu0 0
    %748 = vmatprep.subr.bf16.mxu0 0
    %749 = vmatpush1.bf16.msra.mxu0 0
    %750 = vmatprep.subr.bf16.mxu0 0
    %751 = vmatpush1.bf16.msra.mxu0 0
    %752 = vmatprep.subr.bf16.mxu0 0
    %753 = vmatpush1.bf16.msra.mxu0 0
    %754 = vmatprep.subr.bf16.mxu0 0
    %755 = vmatpush1.bf16.msra.mxu0 0
    %756 = vmatprep.subr.bf16.mxu0 0
    %757 = vmatpush1.bf16.msra.mxu0 %v742
    %758 = vmatprep.subr.bf16.mxu0 0
    %759 = vmatpush1.bf16.msra.mxu0 %v33
    %760 = vmatprep.subr.bf16.mxu0 0
    %761 = vmatpush2.bf16.msra.mxu0 0
    %762 = vmatprep.subr.bf16.mxu0 0
    %763 = vmatpush2.bf16.msra.mxu0 0
    %764 = vmatprep.subr.bf16.mxu0 0
    %765 = vmatpush2.bf16.msra.mxu0 0
    %766 = vmatprep.subr.bf16.mxu0 0
    %767 = vmatpush2.bf16.msra.mxu0 0
    %768 = vmatprep.subr.bf16.mxu0 0
    %769 = vmatpush2.bf16.msra.mxu0 0
    %770 = vmatprep.subr.bf16.mxu0 0
    %771 = vmatpush2.bf16.msra.mxu0 0
    %772 = vmatprep.subr.bf16.mxu0 0
    %773 = vmatpush2.bf16.msra.mxu0 0
    %774 = vmatprep.subr.bf16.mxu0 0
    %775 = vmatpush2.bf16.msra.mxu0 0
    %776 = vmatprep.mubr.bf16.mxu0 0
    %777 = vmatmul.mubr.bf16.gmra.mxu0 %v645
    %v778 = vpop.f32.mrf.mxu0
    %v779 = vadd.f32 %v166, %v778
    %v780 = vpop.f32.mrf.mxu0
    %v781 = vpop.f32.mrf.mxu0
    %v782 = vadd.f32 %v171, %v781
    %v783 = vpop.f32.mrf.mxu0
    %784 = vmatprep.mubr.bf16.mxu0 0
    %785 = vmatmul.mubr.bf16.gmra.mxu0 %v648
    %v786 = vpop.f32.mrf.mxu0
    %v787 = vadd.f32 %v176, %v786
    %v788 = vpop.f32.mrf.mxu0
    %v789 = vpop.f32.mrf.mxu0
    %v790 = vadd.f32 %v181, %v789
    %v791 = vpop.f32.mrf.mxu0
    %792 = vmatprep.mubr.bf16.mxu0 0
    %793 = vmatmul.mubr.bf16.gmra.mxu0 %v651
    %v794 = vpop.f32.mrf.mxu0
    %v795 = vadd.f32 %v186, %v794
    %v796 = vpop.f32.mrf.mxu0
    %v797 = vpop.f32.mrf.mxu0
    %v798 = vadd.f32 %v191, %v797
    %v799 = vpop.f32.mrf.mxu0
    %800 = vmatprep.mubr.bf16.mxu0 0
    %801 = vmatmul.mubr.bf16.gmra.mxu0 %v654
    %v802 = vpop.f32.mrf.mxu0
    %v803 = vadd.f32 %v196, %v802
    %v804 = vpop.f32.mrf.mxu0
    %v805 = vpop.f32.mrf.mxu0
    %v806 = vadd.f32 %v201, %v805
    %v807 = vpop.f32.mrf.mxu0
    %808 = vmatprep.mubr.bf16.mxu0 0
    %809 = vmatmul.mubr.bf16.gmra.mxu0 %v657
    %v810 = vpop.f32.mrf.mxu0
    %v811 = vadd.f32 %v206, %v810
    %v812 = vpop.f32.mrf.mxu0
    %v813 = vpop.f32.mrf.mxu0
    %v814 = vadd.f32 %v211, %v813
    %v815 = vpop.f32.mrf.mxu0
    %816 = vmatprep.mubr.bf16.mxu0 0
    %817 = vmatmul.mubr.bf16.gmra.mxu0 %v660
    %v818 = vpop.f32.mrf.mxu0
    %v819 = vadd.f32 %v216, %v818
    %v820 = vpop.f32.mrf.mxu0
    %v821 = vpop.f32.mrf.mxu0
    %v822 = vadd.f32 %v221, %v821
    %v823 = vpop.f32.mrf.mxu0
    %824 = vmatprep.mubr.bf16.mxu0 0
    %825 = vmatmul.mubr.bf16.gmra.mxu0 %v663
    %v826 = vpop.f32.mrf.mxu0
    %v827 = vadd.f32 %v226, %v826
    %v828 = vpop.f32.mrf.mxu0
    %v829 = vpop.f32.mrf.mxu0
    %v830 = vadd.f32 %v231, %v829
    %v831 = vpop.f32.mrf.mxu0
    %832 = vmatprep.mubr.bf16.mxu0 0
    %833 = vmatmul.mubr.bf16.gmra.mxu0 %v666
    %v834 = vpop.f32.mrf.mxu0
    %v835 = vadd.f32 %v236, %v834
    %v836 = vpop.f32.mrf.mxu0
    %v837 = vpop.f32.mrf.mxu0
    %v838 = vadd.f32 %v241, %v837
    %v839 = vpop.f32.mrf.mxu0
    %840 = vmatprep.mubr.bf16.mxu0 0
    %841 = vmatmul.mubr.bf16.gmra.mxu0 %v669
    %v842 = vpop.f32.mrf.mxu0
    %v843 = vadd.f32 %v246, %v842
    %v844 = vpop.f32.mrf.mxu0
    %v845 = vpop.f32.mrf.mxu0
    %v846 = vadd.f32 %v251, %v845
    %v847 = vpop.f32.mrf.mxu0
    %848 = vmatprep.mubr.bf16.mxu0 0
    %849 = vmatmul.mubr.bf16.gmra.mxu0 %v672
    %v850 = vpop.f32.mrf.mxu0
    %v851 = vadd.f32 %v256, %v850
    %v852 = vpop.f32.mrf.mxu0
    %v853 = vpop.f32.mrf.mxu0
    %v854 = vadd.f32 %v261, %v853
    %v855 = vpop.f32.mrf.mxu0
    %856 = vmatprep.mubr.bf16.mxu0 0
    %857 = vmatmul.mubr.bf16.gmra.mxu0 %v675
    %v858 = vpop.f32.mrf.mxu0
    %v859 = vadd.f32 %v266, %v858
    %v860 = vpop.f32.mrf.mxu0
    %v861 = vpop.f32.mrf.mxu0
    %v862 = vadd.f32 %v271, %v861
    %v863 = vpop.f32.mrf.mxu0
    %864 = vmatprep.mubr.bf16.mxu0 0
    %865 = vmatmul.mubr.bf16.gmra.mxu0 %v678
    %v866 = vpop.f32.mrf.mxu0
    %v867 = vadd.f32 %v276, %v866
    %v868 = vpop.f32.mrf.mxu0
    %v869 = vpop.f32.mrf.mxu0
    %v870 = vadd.f32 %v281, %v869
    %v871 = vpop.f32.mrf.mxu0
    %872 = vmatprep.mubr.bf16.mxu0 0
    %873 = vmatmul.mubr.bf16.gmra.mxu0 %v681
    %v874 = vpop.f32.mrf.mxu0
    %v875 = vadd.f32 %v286, %v874
    %v876 = vpop.f32.mrf.mxu0
    %v877 = vpop.f32.mrf.mxu0
    %v878 = vadd.f32 %v291, %v877
    %v879 = vpop.f32.mrf.mxu0
    %880 = vmatprep.mubr.bf16.mxu0 0
    %881 = vmatmul.mubr.bf16.gmra.mxu0 %v684
    %v882 = vpop.f32.mrf.mxu0
    %v883 = vadd.f32 %v296, %v882
    %v884 = vpop.f32.mrf.mxu0
    %v885 = vpop.f32.mrf.mxu0
    %v886 = vadd.f32 %v301, %v885
    %v887 = vpop.f32.mrf.mxu0
    %888 = vmatprep.mubr.bf16.mxu0 0
    %889 = vmatmul.mubr.bf16.gmra.mxu0 %v687
    %v890 = vpop.f32.mrf.mxu0
    %v891 = vadd.f32 %v306, %v890
    %v892 = vpop.f32.mrf.mxu0
    %v893 = vpop.f32.mrf.mxu0
    %v894 = vadd.f32 %v311, %v893
    %v895 = vpop.f32.mrf.mxu0
    %896 = vmatprep.mubr.bf16.mxu0 0
    %897 = vmatmul.mubr.bf16.gmra.mxu0 %v690
    %v898 = vpop.f32.mrf.mxu0
    %v899 = vadd.f32 %v316, %v898
    %v900 = vpop.f32.mrf.mxu0
    %v901 = vpop.f32.mrf.mxu0
    %v902 = vadd.f32 %v321, %v901
    %v903 = vpop.f32.mrf.mxu0
    %904 = vmatprep.mubr.bf16.mxu0 0
    %905 = vmatmul.mubr.bf16.gmra.mxu0 %v693
    %v906 = vpop.f32.mrf.mxu0
    %v907 = vadd.f32 %v326, %v906
    %v908 = vpop.f32.mrf.mxu0
    %v909 = vpop.f32.mrf.mxu0
    %v910 = vadd.f32 %v331, %v909
    %v911 = vpop.f32.mrf.mxu0
    %912 = vmatprep.mubr.bf16.mxu0 0
    %913 = vmatmul.mubr.bf16.gmra.mxu0 %v696
    %v914 = vpop.f32.mrf.mxu0
    %v915 = vadd.f32 %v336, %v914
    %v916 = vpop.f32.mrf.mxu0
    %v917 = vpop.f32.mrf.mxu0
    %v918 = vadd.f32 %v341, %v917
    %v919 = vpop.f32.mrf.mxu0
    %920 = vmatprep.mubr.bf16.mxu0 0
    %921 = vmatmul.mubr.bf16.gmra.mxu0 %v699
    %v922 = vpop.f32.mrf.mxu0
    %v923 = vadd.f32 %v346, %v922
    %v924 = vpop.f32.mrf.mxu0
    %v925 = vpop.f32.mrf.mxu0
    %v926 = vadd.f32 %v351, %v925
    %v927 = vpop.f32.mrf.mxu0
    %928 = vmatprep.mubr.bf16.mxu0 0
    %929 = vmatmul.mubr.bf16.gmra.mxu0 %v702
    %v930 = vpop.f32.mrf.mxu0
    %v931 = vadd.f32 %v356, %v930
    %v932 = vpop.f32.mrf.mxu0
    %v933 = vpop.f32.mrf.mxu0
    %v934 = vadd.f32 %v361, %v933
    %v935 = vpop.f32.mrf.mxu0
    %936 = vmatprep.mubr.bf16.mxu0 0
    %937 = vmatmul.mubr.bf16.gmra.mxu0 %v705
    %v938 = vpop.f32.mrf.mxu0
    %v939 = vadd.f32 %v366, %v938
    %v940 = vpop.f32.mrf.mxu0
    %v941 = vpop.f32.mrf.mxu0
    %v942 = vadd.f32 %v371, %v941
    %v943 = vpop.f32.mrf.mxu0
    %944 = vmatprep.mubr.bf16.mxu0 0
    %945 = vmatmul.mubr.bf16.gmra.mxu0 %v708
    %v946 = vpop.f32.mrf.mxu0
    %v947 = vadd.f32 %v376, %v946
    %v948 = vpop.f32.mrf.mxu0
    %v949 = vpop.f32.mrf.mxu0
    %v950 = vadd.f32 %v381, %v949
    %v951 = vpop.f32.mrf.mxu0
    %952 = vmatprep.mubr.bf16.mxu0 0
    %953 = vmatmul.mubr.bf16.gmra.mxu0 %v711
    %v954 = vpop.f32.mrf.mxu0
    %v955 = vadd.f32 %v386, %v954
    %v956 = vpop.f32.mrf.mxu0
    %v957 = vpop.f32.mrf.mxu0
    %v958 = vadd.f32 %v391, %v957
    %v959 = vpop.f32.mrf.mxu0
    %960 = vmatprep.mubr.bf16.mxu0 0
    %961 = vmatmul.mubr.bf16.gmra.mxu0 %v714
    %v962 = vpop.f32.mrf.mxu0
    %v963 = vadd.f32 %v396, %v962
    %v964 = vpop.f32.mrf.mxu0
    %v965 = vpop.f32.mrf.mxu0
    %v966 = vadd.f32 %v401, %v965
    %v967 = vpop.f32.mrf.mxu0
    %968 = vmatprep.mubr.bf16.mxu0 0
    %969 = vmatmul.mubr.bf16.gmra.mxu0 %v717
    %v970 = vpop.f32.mrf.mxu0
    %v971 = vadd.f32 %v406, %v970
    %v972 = vpop.f32.mrf.mxu0
    %v973 = vpop.f32.mrf.mxu0
    %v974 = vadd.f32 %v411, %v973
    %v975 = vpop.f32.mrf.mxu0
    %976 = vmatprep.mubr.bf16.mxu0 0
    %977 = vmatmul.mubr.bf16.gmra.mxu0 %v720
    %v978 = vpop.f32.mrf.mxu0
    %v979 = vadd.f32 %v416, %v978
    %v980 = vpop.f32.mrf.mxu0
    %v981 = vpop.f32.mrf.mxu0
    %v982 = vadd.f32 %v421, %v981
    %v983 = vpop.f32.mrf.mxu0
    %984 = vmatprep.mubr.bf16.mxu0 0
    %985 = vmatmul.mubr.bf16.gmra.mxu0 %v723
    %v986 = vpop.f32.mrf.mxu0
    %v987 = vadd.f32 %v426, %v986
    %v988 = vpop.f32.mrf.mxu0
    %v989 = vpop.f32.mrf.mxu0
    %v990 = vadd.f32 %v431, %v989
    %v991 = vpop.f32.mrf.mxu0
    %992 = vmatprep.mubr.bf16.mxu0 0
    %993 = vmatmul.mubr.bf16.gmra.mxu0 %v726
    %v994 = vpop.f32.mrf.mxu0
    %v995 = vadd.f32 %v436, %v994
    %v996 = vpop.f32.mrf.mxu0
    %v997 = vpop.f32.mrf.mxu0
    %v998 = vadd.f32 %v441, %v997
    %v999 = vpop.f32.mrf.mxu0
    %1000 = vmatprep.mubr.bf16.mxu0 0
    %1001 = vmatmul.mubr.bf16.gmra.mxu0 %v729
    %v1002 = vpop.f32.mrf.mxu0
    %v1003 = vadd.f32 %v446, %v1002
    %v1004 = vpop.f32.mrf.mxu0
    %v1005 = vpop.f32.mrf.mxu0
    %v1006 = vadd.f32 %v451, %v1005
    %v1007 = vpop.f32.mrf.mxu0
    %1008 = vmatprep.mubr.bf16.mxu0 0
    %1009 = vmatmul.mubr.bf16.gmra.mxu0 %v732
    %v1010 = vpop.f32.mrf.mxu0
    %v1011 = vadd.f32 %v456, %v1010
    %v1012 = vpop.f32.mrf.mxu0
    %v1013 = vpop.f32.mrf.mxu0
    %v1014 = vadd.f32 %v461, %v1013
    %v1015 = vpop.f32.mrf.mxu0
    %1016 = vmatprep.mubr.bf16.mxu0 0
    %1017 = vmatmul.mubr.bf16.gmra.mxu0 %v735
    %v1018 = vpop.f32.mrf.mxu0
    %v1019 = vadd.f32 %v466, %v1018
    %v1020 = vpop.f32.mrf.mxu0
    %v1021 = vpop.f32.mrf.mxu0
    %v1022 = vadd.f32 %v471, %v1021
    %v1023 = vpop.f32.mrf.mxu0
    %1024 = vmatprep.mubr.bf16.mxu0 0
    %1025 = vmatmul.mubr.bf16.gmra.mxu0 %v738
    %v1026 = vpop.f32.mrf.mxu0
    %v1027 = vadd.f32 %v476, %v1026
    %v1028 = vpop.f32.mrf.mxu0
    %v1029 = vpop.f32.mrf.mxu0
    %v1030 = vadd.f32 %v481, %v1029
    %v1031 = vpop.f32.mrf.mxu0
    %1032 = vdwg.mxu0
    %v1033 = vmax.f32 %v779, 0.0
    %v1034 = vmax.f32 %v782, 0.0
    %v1035 = vmax.f32 %v787, 0.0
    %v1036 = vmax.f32 %v790, 0.0
    %v1037 = vmax.f32 %v795, 0.0
    %v1038 = vmax.f32 %v798, 0.0
    %v1039 = vmax.f32 %v803, 0.0
    %v1040 = vmax.f32 %v806, 0.0
    %v1041 = vmax.f32 %v811, 0.0
    %v1042 = vmax.f32 %v814, 0.0
    %v1043 = vmax.f32 %v819, 0.0
    %v1044 = vmax.f32 %v822, 0.0
    %v1045 = vmax.f32 %v827, 0.0
    %v1046 = vmax.f32 %v830, 0.0
    %v1047 = vmax.f32 %v835, 0.0
    %v1048 = vmax.f32 %v838, 0.0
    %v1049 = vmax.f32 %v843, 0.0
    %v1050 = vmax.f32 %v846, 0.0
    %v1051 = vmax.f32 %v851, 0.0
    %v1052 = vmax.f32 %v854, 0.0
    %v1053 = vmax.f32 %v859, 0.0
    %v1054 = vmax.f32 %v862, 0.0
    %v1055 = vmax.f32 %v867, 0.0
    %v1056 = vmax.f32 %v870, 0.0
    %v1057 = vmax.f32 %v875, 0.0
    %v1058 = vmax.f32 %v878, 0.0
    %v1059 = vmax.f32 %v883, 0.0
    %v1060 = vmax.f32 %v886, 0.0
    %v1061 = vmax.f32 %v891, 0.0
    %v1062 = vmax.f32 %v894, 0.0
    %v1063 = vmax.f32 %v899, 0.0
    %v1064 = vmax.f32 %v902, 0.0
    %v1065 = vmax.f32 %v907, 0.0
    %v1066 = vmax.f32 %v910, 0.0
    %v1067 = vmax.f32 %v915, 0.0
    %v1068 = vmax.f32 %v918, 0.0
    %v1069 = vmax.f32 %v923, 0.0
    %v1070 = vmax.f32 %v926, 0.0
    %v1071 = vmax.f32 %v931, 0.0
    %v1072 = vmax.f32 %v934, 0.0
    %v1073 = vmax.f32 %v939, 0.0
    %v1074 = vmax.f32 %v942, 0.0
    %v1075 = vmax.f32 %v947, 0.0
    %v1076 = vmax.f32 %v950, 0.0
    %v1077 = vmax.f32 %v955, 0.0
    %v1078 = vmax.f32 %v958, 0.0
    %v1079 = vmax.f32 %v963, 0.0
    %v1080 = vmax.f32 %v966, 0.0
    %v1081 = vmax.f32 %v971, 0.0
    %v1082 = vmax.f32 %v974, 0.0
    %v1083 = vmax.f32 %v979, 0.0
    %v1084 = vmax.f32 %v982, 0.0
    %v1085 = vmax.f32 %v987, 0.0
    %v1086 = vmax.f32 %v990, 0.0
    %v1087 = vmax.f32 %v995, 0.0
    %v1088 = vmax.f32 %v998, 0.0
    %v1089 = vmax.f32 %v1003, 0.0
    %v1090 = vmax.f32 %v1006, 0.0
    %v1091 = vmax.f32 %v1011, 0.0
    %v1092 = vmax.f32 %v1014, 0.0
    %v1093 = vmax.f32 %v1019, 0.0
    %v1094 = vmax.f32 %v1022, 0.0
    %v1095 = vmax.f32 %v1027, 0.0
    %v1096 = vmax.f32 %v1030, 0.0
    %v1097 = vpack.c.bf16 %v1034, %v1033
    %v1098 = vpack.c.bf16 %v1036, %v1035
    %v1099 = vpack.c.bf16 %v1038, %v1037
    %v1100 = vpack.c.bf16 %v1040, %v1039
    %v1101 = vpack.c.bf16 %v1042, %v1041
    %v1102 = vpack.c.bf16 %v1044, %v1043
    %v1103 = vpack.c.bf16 %v1046, %v1045
    %v1104 = vpack.c.bf16 %v1048, %v1047
    %v1105 = vpack.c.bf16 %v1050, %v1049
    %v1106 = vpack.c.bf16 %v1052, %v1051
    %v1107 = vpack.c.bf16 %v1054, %v1053
    %v1108 = vpack.c.bf16 %v1056, %v1055
    %v1109 = vpack.c.bf16 %v1058, %v1057
    %v1110 = vpack.c.bf16 %v1060, %v1059
    %v1111 = vpack.c.bf16 %v1062, %v1061
    %v1112 = vpack.c.bf16 %v1064, %v1063
    %v1113 = vpack.c.bf16 %v1066, %v1065
    %v1114 = vpack.c.bf16 %v1068, %v1067
    %v1115 = vpack.c.bf16 %v1070, %v1069
    %v1116 = vpack.c.bf16 %v1072, %v1071
    %v1117 = vpack.c.bf16 %v1074, %v1073
    %v1118 = vpack.c.bf16 %v1076, %v1075
    %v1119 = vpack.c.bf16 %v1078, %v1077
    %v1120 = vpack.c.bf16 %v1080, %v1079
    %v1121 = vpack.c.bf16 %v1082, %v1081
    %v1122 = vpack.c.bf16 %v1084, %v1083
    %v1123 = vpack.c.bf16 %v1086, %v1085
    %v1124 = vpack.c.bf16 %v1088, %v1087
    %v1125 = vpack.c.bf16 %v1090, %v1089
    %v1126 = vpack.c.bf16 %v1092, %v1091
    %v1127 = vpack.c.bf16 %v1094, %v1093
    %v1128 = vpack.c.bf16 %v1096, %v1095
    %v1129 = vld [vmem:[%s3] sm:$0xff]
    %v1130 = vld [vmem:[%s3 + $0x8] sm:$0xff]
    %v1131 = vld [vmem:[%s3 + $0x10] sm:$0xff]
    %v1132 = vld [vmem:[%s3 + $0x18] sm:$0xff]
    %v1133 = vld [vmem:[%s3 + $0x20] sm:$0xff]
    %v1134 = vld [vmem:[%s3 + $0x28] sm:$0xff]
    %v1135 = vld [vmem:[%s3 + $0x30] sm:$0xff]
    %v1136 = vld [vmem:[%s3 + $0x38] sm:$0xff]
    %v1137 = vld [vmem:[%s3 + $0x40] sm:$0xff]
    %v1138 = vld [vmem:[%s3 + $0x48] sm:$0xff]
    %v1139 = vld [vmem:[%s3 + $0x50] sm:$0xff]
    %v1140 = vld [vmem:[%s3 + $0x58] sm:$0xff]
    %v1141 = vld [vmem:[%s3 + $0x60] sm:$0xff]
    %v1142 = vld [vmem:[%s3 + $0x68] sm:$0xff]
    %v1143 = vld [vmem:[%s3 + $0x70] sm:$0xff]
    %v1144 = vld [vmem:[%s3 + $0x78] sm:$0xff]
    %v1145 = vld [vmem:[%s3 + $0x80] sm:$0xff]
    %v1146 = vld [vmem:[%s3 + $0x88] sm:$0xff]
    %v1147 = vld [vmem:[%s3 + $0x90] sm:$0xff]
    %v1148 = vld [vmem:[%s3 + $0x98] sm:$0xff]
    %v1149 = vld [vmem:[%s3 + $0xa0] sm:$0xff]
    %v1150 = vld [vmem:[%s3 + $0xa8] sm:$0xff]
    %v1151 = vld [vmem:[%s3 + $0xb0] sm:$0xff]
    %v1152 = vld [vmem:[%s3 + $0xb8] sm:$0xff]
    %v1153 = vld [vmem:[%s3 + $0xc0] sm:$0xff]
    %v1154 = vld [vmem:[%s3 + $0xc8] sm:$0xff]
    %v1155 = vld [vmem:[%s3 + $0xd0] sm:$0xff]
    %v1156 = vld [vmem:[%s3 + $0xd8] sm:$0xff]
    %v1157 = vld [vmem:[%s3 + $0xe0] sm:$0xff]
    %v1158 = vld [vmem:[%s3 + $0xe8] sm:$0xff]
    %v1159 = vld [vmem:[%s3 + $0xf0] sm:$0xff]
    %v1160 = vld [vmem:[%s3 + $0xf8] sm:$0xff]
    %v1161 = vld [vmem:[%s3 + $0x100] sm:$0xff]
    %v1162 = vld [vmem:[%s3 + $0x108] sm:$0xff]
    %v1163 = vld [vmem:[%s3 + $0x110] sm:$0xff]
    %v1164 = vld [vmem:[%s3 + $0x118] sm:$0xff]
    %v1165 = vld [vmem:[%s3 + $0x120] sm:$0xff]
    %v1166 = vld [vmem:[%s3 + $0x128] sm:$0xff]
    %v1167 = vld [vmem:[%s3 + $0x130] sm:$0xff]
    %v1168 = vld [vmem:[%s3 + $0x138] sm:$0xff]
    %v1169 = vld [vmem:[%s3 + $0x140] sm:$0xff]
    %v1170 = vld [vmem:[%s3 + $0x148] sm:$0xff]
    %v1171 = vld [vmem:[%s3 + $0x150] sm:$0xff]
    %v1172 = vld [vmem:[%s3 + $0x158] sm:$0xff]
    %v1173 = vld [vmem:[%s3 + $0x160] sm:$0xff]
    %v1174 = vld [vmem:[%s3 + $0x168] sm:$0xff]
    %v1175 = vld [vmem:[%s3 + $0x170] sm:$0xff]
    %v1176 = vld [vmem:[%s3 + $0x178] sm:$0xff]
    %v1177 = vld [vmem:[%s3 + $0x180] sm:$0xff]
    %v1178 = vld [vmem:[%s3 + $0x188] sm:$0xff]
    %v1179 = vld [vmem:[%s3 + $0x190] sm:$0xff]
    %v1180 = vld [vmem:[%s3 + $0x198] sm:$0xff]
    %v1181 = vld [vmem:[%s3 + $0x1a0] sm:$0xff]
    %v1182 = vld [vmem:[%s3 + $0x1a8] sm:$0xff]
    %v1183 = vld [vmem:[%s3 + $0x1b0] sm:$0xff]
    %v1184 = vld [vmem:[%s3 + $0x1b8] sm:$0xff]
    %v1185 = vld [vmem:[%s3 + $0x1c0] sm:$0xff]
    %v1186 = vld [vmem:[%s3 + $0x1c8] sm:$0xff]
    %v1187 = vld [vmem:[%s3 + $0x1d0] sm:$0xff]
    %v1188 = vld [vmem:[%s3 + $0x1d8] sm:$0xff]
    %v1189 = vld [vmem:[%s3 + $0x1e0] sm:$0xff]
    %v1190 = vld [vmem:[%s3 + $0x1e8] sm:$0xff]
    %v1191 = vld [vmem:[%s3 + $0x1f0] sm:$0xff]
    %v1192 = vld [vmem:[%s3 + $0x1f8] sm:$0xff]
    %v1193 = vld [vmem:[%s3 + $0x200] sm:$0xff]
    %v1194 = vld [vmem:[%s3 + $0x208] sm:$0xff]
    %v1195 = vld [vmem:[%s3 + $0x210] sm:$0xff]
    %v1196 = vld [vmem:[%s3 + $0x218] sm:$0xff]
    %v1197 = vld [vmem:[%s3 + $0x220] sm:$0xff]
    %v1198 = vld [vmem:[%s3 + $0x228] sm:$0xff]
    %v1199 = vld [vmem:[%s3 + $0x230] sm:$0xff]
    %v1200 = vld [vmem:[%s3 + $0x238] sm:$0xff]
    %v1201 = vld [vmem:[%s3 + $0x240] sm:$0xff]
    %v1202 = vld [vmem:[%s3 + $0x248] sm:$0xff]
    %v1203 = vld [vmem:[%s3 + $0x250] sm:$0xff]
    %v1204 = vld [vmem:[%s3 + $0x258] sm:$0xff]
    %v1205 = vld [vmem:[%s3 + $0x260] sm:$0xff]
    %v1206 = vld [vmem:[%s3 + $0x268] sm:$0xff]
    %v1207 = vld [vmem:[%s3 + $0x270] sm:$0xff]
    %v1208 = vld [vmem:[%s3 + $0x278] sm:$0xff]
    %v1209 = vld [vmem:[%s3 + $0x280] sm:$0xff]
    %v1210 = vld [vmem:[%s3 + $0x288] sm:$0xff]
    %v1211 = vld [vmem:[%s3 + $0x290] sm:$0xff]
    %v1212 = vld [vmem:[%s3 + $0x298] sm:$0xff]
    %v1213 = vld [vmem:[%s3 + $0x2a0] sm:$0xff]
    %v1214 = vld [vmem:[%s3 + $0x2a8] sm:$0xff]
    %v1215 = vld [vmem:[%s3 + $0x2b0] sm:$0xff]
    %v1216 = vld [vmem:[%s3 + $0x2b8] sm:$0xff]
    %v1217 = vld [vmem:[%s3 + $0x2c0] sm:$0xff]
    %v1218 = vld [vmem:[%s3 + $0x2c8] sm:$0xff]
    %v1219 = vld [vmem:[%s3 + $0x2d0] sm:$0xff]
    %v1220 = vld [vmem:[%s3 + $0x2d8] sm:$0xff]
    %v1221 = vld [vmem:[%s3 + $0x2e0] sm:$0xff]
    %v1222 = vld [vmem:[%s3 + $0x2e8] sm:$0xff]
    %v1223 = vld [vmem:[%s3 + $0x2f0] sm:$0xff]
    %v1224 = vld [vmem:[%s3 + $0x2f8] sm:$0xff]
    %v1225 = vld [vmem:[%s3 + $0x300] sm:$0xff]
    %v1226 = vld [vmem:[%s3 + $0x308] sm:$0xff]
    %v1227 = vld [vmem:[%s3 + $0x310] sm:$0xff]
    %v1228 = vld [vmem:[%s3 + $0x318] sm:$0xff]
    %v1229 = vld [vmem:[%s3 + $0x320] sm:$0xff]
    %v1230 = vld [vmem:[%s3 + $0x328] sm:$0xff]
    %v1231 = vld [vmem:[%s3 + $0x330] sm:$0xff]
    %v1232 = vld [vmem:[%s3 + $0x338] sm:$0xff]
    %v1233 = vld [vmem:[%s3 + $0x340] sm:$0xff]
    %v1234 = vld [vmem:[%s3 + $0x348] sm:$0xff]
    %v1235 = vld [vmem:[%s3 + $0x350] sm:$0xff]
    %v1236 = vld [vmem:[%s3 + $0x358] sm:$0xff]
    %v1237 = vld [vmem:[%s3 + $0x360] sm:$0xff]
    %v1238 = vld [vmem:[%s3 + $0x368] sm:$0xff]
    %v1239 = vld [vmem:[%s3 + $0x370] sm:$0xff]
    %v1240 = vld [vmem:[%s3 + $0x378] sm:$0xff]
    %v1241 = vld [vmem:[%s3 + $0x380] sm:$0xff]
    %v1242 = vld [vmem:[%s3 + $0x388] sm:$0xff]
    %v1243 = vld [vmem:[%s3 + $0x390] sm:$0xff]
    %v1244 = vld [vmem:[%s3 + $0x398] sm:$0xff]
    %v1245 = vld [vmem:[%s3 + $0x3a0] sm:$0xff]
    %v1246 = vld [vmem:[%s3 + $0x3a8] sm:$0xff]
    %v1247 = vld [vmem:[%s3 + $0x3b0] sm:$0xff]
    %v1248 = vld [vmem:[%s3 + $0x3b8] sm:$0xff]
    %v1249 = vld [vmem:[%s3 + $0x3c0] sm:$0xff]
    %v1250 = vld [vmem:[%s3 + $0x3c8] sm:$0xff]
    %v1251 = vld [vmem:[%s3 + $0x3d0] sm:$0xff]
    %v1252 = vld [vmem:[%s3 + $0x3d8] sm:$0xff]
    %v1253 = vld [vmem:[%s3 + $0x3e0] sm:$0xff]
    %v1254 = vld [vmem:[%s3 + $0x3e8] sm:$0xff]
    %v1255 = vld [vmem:[%s3 + $0x3f0] sm:$0xff]
    %v1256 = vld [vmem:[%s3 + $0x3f8] sm:$0xff]
    %v1257 = vld [vmem:[%s4] sm:$0xff]
    %v1258 = vld [vmem:[%s4 + $0x8] sm:$0xff]
    %v1259 = vld [vmem:[%s4 + $0x10] sm:$0xff]
    %v1260 = vld [vmem:[%s4 + $0x18] sm:$0xff]
    %v1261 = vld [vmem:[%s4 + $0x20] sm:$0xff]
    %v1262 = vld [vmem:[%s4 + $0x28] sm:$0xff]
    %v1263 = vld [vmem:[%s4 + $0x30] sm:$0xff]
    %v1264 = vld [vmem:[%s4 + $0x38] sm:$0xff]
    %v1265 = vld [vmem:[%s4 + $0x40] sm:$0xff]
    %v1266 = vld [vmem:[%s4 + $0x48] sm:$0xff]
    %v1267 = vld [vmem:[%s4 + $0x50] sm:$0xff]
    %v1268 = vld [vmem:[%s4 + $0x58] sm:$0xff]
    %v1269 = vld [vmem:[%s4 + $0x60] sm:$0xff]
    %v1270 = vld [vmem:[%s4 + $0x68] sm:$0xff]
    %v1271 = vld [vmem:[%s4 + $0x70] sm:$0xff]
    %v1272 = vld [vmem:[%s4 + $0x78] sm:$0xff]
    %v1273 = vld [vmem:[%s4 + $0x80] sm:$0xff]
    %v1274 = vld [vmem:[%s4 + $0x88] sm:$0xff]
    %v1275 = vld [vmem:[%s4 + $0x90] sm:$0xff]
    %v1276 = vld [vmem:[%s4 + $0x98] sm:$0xff]
    %v1277 = vld [vmem:[%s4 + $0xa0] sm:$0xff]
    %v1278 = vld [vmem:[%s4 + $0xa8] sm:$0xff]
    %v1279 = vld [vmem:[%s4 + $0xb0] sm:$0xff]
    %v1280 = vld [vmem:[%s4 + $0xb8] sm:$0xff]
    %v1281 = vld [vmem:[%s4 + $0xc0] sm:$0xff]
    %v1282 = vld [vmem:[%s4 + $0xc8] sm:$0xff]
    %v1283 = vld [vmem:[%s4 + $0xd0] sm:$0xff]
    %v1284 = vld [vmem:[%s4 + $0xd8] sm:$0xff]
    %v1285 = vld [vmem:[%s4 + $0xe0] sm:$0xff]
    %v1286 = vld [vmem:[%s4 + $0xe8] sm:$0xff]
    %v1287 = vld [vmem:[%s4 + $0xf0] sm:$0xff]
    %v1288 = vld [vmem:[%s4 + $0xf8] sm:$0xff]
    %v1289 = vld [vmem:[%s4 + $0x100] sm:$0xff]
    %v1290 = vld [vmem:[%s4 + $0x108] sm:$0xff]
    %v1291 = vld [vmem:[%s4 + $0x110] sm:$0xff]
    %v1292 = vld [vmem:[%s4 + $0x118] sm:$0xff]
    %v1293 = vld [vmem:[%s4 + $0x120] sm:$0xff]
    %v1294 = vld [vmem:[%s4 + $0x128] sm:$0xff]
    %v1295 = vld [vmem:[%s4 + $0x130] sm:$0xff]
    %v1296 = vld [vmem:[%s4 + $0x138] sm:$0xff]
    %v1297 = vld [vmem:[%s4 + $0x140] sm:$0xff]
    %v1298 = vld [vmem:[%s4 + $0x148] sm:$0xff]
    %v1299 = vld [vmem:[%s4 + $0x150] sm:$0xff]
    %v1300 = vld [vmem:[%s4 + $0x158] sm:$0xff]
    %v1301 = vld [vmem:[%s4 + $0x160] sm:$0xff]
    %v1302 = vld [vmem:[%s4 + $0x168] sm:$0xff]
    %v1303 = vld [vmem:[%s4 + $0x170] sm:$0xff]
    %v1304 = vld [vmem:[%s4 + $0x178] sm:$0xff]
    %v1305 = vld [vmem:[%s4 + $0x180] sm:$0xff]
    %v1306 = vld [vmem:[%s4 + $0x188] sm:$0xff]
    %v1307 = vld [vmem:[%s4 + $0x190] sm:$0xff]
    %v1308 = vld [vmem:[%s4 + $0x198] sm:$0xff]
    %v1309 = vld [vmem:[%s4 + $0x1a0] sm:$0xff]
    %v1310 = vld [vmem:[%s4 + $0x1a8] sm:$0xff]
    %v1311 = vld [vmem:[%s4 + $0x1b0] sm:$0xff]
    %v1312 = vld [vmem:[%s4 + $0x1b8] sm:$0xff]
    %v1313 = vld [vmem:[%s4 + $0x1c0] sm:$0xff]
    %v1314 = vld [vmem:[%s4 + $0x1c8] sm:$0xff]
    %v1315 = vld [vmem:[%s4 + $0x1d0] sm:$0xff]
    %v1316 = vld [vmem:[%s4 + $0x1d8] sm:$0xff]
    %v1317 = vld [vmem:[%s4 + $0x1e0] sm:$0xff]
    %v1318 = vld [vmem:[%s4 + $0x1e8] sm:$0xff]
    %v1319 = vld [vmem:[%s4 + $0x1f0] sm:$0xff]
    %v1320 = vld [vmem:[%s4 + $0x1f8] sm:$0xff]
    %1322 = vset.pattern.permute.xlu0 0
    %1323 = vperm.xlu0 %1322, %v1257
    %v1324 = vpop.permute.xlu0 %1323
    %1327 = vset.pattern.permute.xlu0 0
    %1328 = vperm.xlu0 %1327, %v1258
    %v1329 = vpop.permute.xlu0 %1328
    %1332 = vset.pattern.permute.xlu0 0
    %1333 = vperm.xlu0 %1332, %v1259
    %v1334 = vpop.permute.xlu0 %1333
    %1337 = vset.pattern.permute.xlu0 0
    %1338 = vperm.xlu0 %1337, %v1260
    %v1339 = vpop.permute.xlu0 %1338
    %1342 = vset.pattern.permute.xlu0 0
    %1343 = vperm.xlu0 %1342, %v1261
    %v1344 = vpop.permute.xlu0 %1343
    %1347 = vset.pattern.permute.xlu0 0
    %1348 = vperm.xlu0 %1347, %v1262
    %v1349 = vpop.permute.xlu0 %1348
    %1352 = vset.pattern.permute.xlu0 0
    %1353 = vperm.xlu0 %1352, %v1263
    %v1354 = vpop.permute.xlu0 %1353
    %1357 = vset.pattern.permute.xlu0 0
    %1358 = vperm.xlu0 %1357, %v1264
    %v1359 = vpop.permute.xlu0 %1358
    %1362 = vset.pattern.permute.xlu0 0
    %1363 = vperm.xlu0 %1362, %v1265
    %v1364 = vpop.permute.xlu0 %1363
    %1367 = vset.pattern.permute.xlu0 0
    %1368 = vperm.xlu0 %1367, %v1266
    %v1369 = vpop.permute.xlu0 %1368
    %1372 = vset.pattern.permute.xlu0 0
    %1373 = vperm.xlu0 %1372, %v1267
    %v1374 = vpop.permute.xlu0 %1373
    %1377 = vset.pattern.permute.xlu0 0
    %1378 = vperm.xlu0 %1377, %v1268
    %v1379 = vpop.permute.xlu0 %1378
    %1382 = vset.pattern.permute.xlu0 0
    %1383 = vperm.xlu0 %1382, %v1269
    %v1384 = vpop.permute.xlu0 %1383
    %1387 = vset.pattern.permute.xlu0 0
    %1388 = vperm.xlu0 %1387, %v1270
    %v1389 = vpop.permute.xlu0 %1388
    %1392 = vset.pattern.permute.xlu0 0
    %1393 = vperm.xlu0 %1392, %v1271
    %v1394 = vpop.permute.xlu0 %1393
    %1397 = vset.pattern.permute.xlu0 0
    %1398 = vperm.xlu0 %1397, %v1272
    %v1399 = vpop.permute.xlu0 %1398
    %1402 = vset.pattern.permute.xlu0 0
    %1403 = vperm.xlu0 %1402, %v1273
    %v1404 = vpop.permute.xlu0 %1403
    %1407 = vset.pattern.permute.xlu0 0
    %1408 = vperm.xlu0 %1407, %v1274
    %v1409 = vpop.permute.xlu0 %1408
    %1412 = vset.pattern.permute.xlu0 0
    %1413 = vperm.xlu0 %1412, %v1275
    %v1414 = vpop.permute.xlu0 %1413
    %1417 = vset.pattern.permute.xlu0 0
    %1418 = vperm.xlu0 %1417, %v1276
    %v1419 = vpop.permute.xlu0 %1418
    %1422 = vset.pattern.permute.xlu0 0
    %1423 = vperm.xlu0 %1422, %v1277
    %v1424 = vpop.permute.xlu0 %1423
    %1427 = vset.pattern.permute.xlu0 0
    %1428 = vperm.xlu0 %1427, %v1278
    %v1429 = vpop.permute.xlu0 %1428
    %1432 = vset.pattern.permute.xlu0 0
    %1433 = vperm.xlu0 %1432, %v1279
    %v1434 = vpop.permute.xlu0 %1433
    %1437 = vset.pattern.permute.xlu0 0
    %1438 = vperm.xlu0 %1437, %v1280
    %v1439 = vpop.permute.xlu0 %1438
    %1442 = vset.pattern.permute.xlu0 0
    %1443 = vperm.xlu0 %1442, %v1281
    %v1444 = vpop.permute.xlu0 %1443
    %1447 = vset.pattern.permute.xlu0 0
    %1448 = vperm.xlu0 %1447, %v1282
    %v1449 = vpop.permute.xlu0 %1448
    %1452 = vset.pattern.permute.xlu0 0
    %1453 = vperm.xlu0 %1452, %v1283
    %v1454 = vpop.permute.xlu0 %1453
    %1457 = vset.pattern.permute.xlu0 0
    %1458 = vperm.xlu0 %1457, %v1284
    %v1459 = vpop.permute.xlu0 %1458
    %1462 = vset.pattern.permute.xlu0 0
    %1463 = vperm.xlu0 %1462, %v1285
    %v1464 = vpop.permute.xlu0 %1463
    %1467 = vset.pattern.permute.xlu0 0
    %1468 = vperm.xlu0 %1467, %v1286
    %v1469 = vpop.permute.xlu0 %1468
    %1472 = vset.pattern.permute.xlu0 0
    %1473 = vperm.xlu0 %1472, %v1287
    %v1474 = vpop.permute.xlu0 %1473
    %1477 = vset.pattern.permute.xlu0 0
    %1478 = vperm.xlu0 %1477, %v1288
    %v1479 = vpop.permute.xlu0 %1478
    %1482 = vset.pattern.permute.xlu0 0
    %1483 = vperm.xlu0 %1482, %v1289
    %v1484 = vpop.permute.xlu0 %1483
    %1487 = vset.pattern.permute.xlu0 0
    %1488 = vperm.xlu0 %1487, %v1290
    %v1489 = vpop.permute.xlu0 %1488
    %1492 = vset.pattern.permute.xlu0 0
    %1493 = vperm.xlu0 %1492, %v1291
    %v1494 = vpop.permute.xlu0 %1493
    %1497 = vset.pattern.permute.xlu0 0
    %1498 = vperm.xlu0 %1497, %v1292
    %v1499 = vpop.permute.xlu0 %1498
    %1502 = vset.pattern.permute.xlu0 0
    %1503 = vperm.xlu0 %1502, %v1293
    %v1504 = vpop.permute.xlu0 %1503
    %1507 = vset.pattern.permute.xlu0 0
    %1508 = vperm.xlu0 %1507, %v1294
    %v1509 = vpop.permute.xlu0 %1508
    %1512 = vset.pattern.permute.xlu0 0
    %1513 = vperm.xlu0 %1512, %v1295
    %v1514 = vpop.permute.xlu0 %1513
    %1517 = vset.pattern.permute.xlu0 0
    %1518 = vperm.xlu0 %1517, %v1296
    %v1519 = vpop.permute.xlu0 %1518
    %1522 = vset.pattern.permute.xlu0 0
    %1523 = vperm.xlu0 %1522, %v1297
    %v1524 = vpop.permute.xlu0 %1523
    %1527 = vset.pattern.permute.xlu0 0
    %1528 = vperm.xlu0 %1527, %v1298
    %v1529 = vpop.permute.xlu0 %1528
    %1532 = vset.pattern.permute.xlu0 0
    %1533 = vperm.xlu0 %1532, %v1299
    %v1534 = vpop.permute.xlu0 %1533
    %1537 = vset.pattern.permute.xlu0 0
    %1538 = vperm.xlu0 %1537, %v1300
    %v1539 = vpop.permute.xlu0 %1538
    %1542 = vset.pattern.permute.xlu0 0
    %1543 = vperm.xlu0 %1542, %v1301
    %v1544 = vpop.permute.xlu0 %1543
    %1547 = vset.pattern.permute.xlu0 0
    %1548 = vperm.xlu0 %1547, %v1302
    %v1549 = vpop.permute.xlu0 %1548
    %1552 = vset.pattern.permute.xlu0 0
    %1553 = vperm.xlu0 %1552, %v1303
    %v1554 = vpop.permute.xlu0 %1553
    %1557 = vset.pattern.permute.xlu0 0
    %1558 = vperm.xlu0 %1557, %v1304
    %v1559 = vpop.permute.xlu0 %1558
    %1562 = vset.pattern.permute.xlu0 0
    %1563 = vperm.xlu0 %1562, %v1305
    %v1564 = vpop.permute.xlu0 %1563
    %1567 = vset.pattern.permute.xlu0 0
    %1568 = vperm.xlu0 %1567, %v1306
    %v1569 = vpop.permute.xlu0 %1568
    %1572 = vset.pattern.permute.xlu0 0
    %1573 = vperm.xlu0 %1572, %v1307
    %v1574 = vpop.permute.xlu0 %1573
    %1577 = vset.pattern.permute.xlu0 0
    %1578 = vperm.xlu0 %1577, %v1308
    %v1579 = vpop.permute.xlu0 %1578
    %1582 = vset.pattern.permute.xlu0 0
    %1583 = vperm.xlu0 %1582, %v1309
    %v1584 = vpop.permute.xlu0 %1583
    %1587 = vset.pattern.permute.xlu0 0
    %1588 = vperm.xlu0 %1587, %v1310
    %v1589 = vpop.permute.xlu0 %1588
    %1592 = vset.pattern.permute.xlu0 0
    %1593 = vperm.xlu0 %1592, %v1311
    %v1594 = vpop.permute.xlu0 %1593
    %1597 = vset.pattern.permute.xlu0 0
    %1598 = vperm.xlu0 %1597, %v1312
    %v1599 = vpop.permute.xlu0 %1598
    %1602 = vset.pattern.permute.xlu0 0
    %1603 = vperm.xlu0 %1602, %v1313
    %v1604 = vpop.permute.xlu0 %1603
    %1607 = vset.pattern.permute.xlu0 0
    %1608 = vperm.xlu0 %1607, %v1314
    %v1609 = vpop.permute.xlu0 %1608
    %1612 = vset.pattern.permute.xlu0 0
    %1613 = vperm.xlu0 %1612, %v1315
    %v1614 = vpop.permute.xlu0 %1613
    %1617 = vset.pattern.permute.xlu0 0
    %1618 = vperm.xlu0 %1617, %v1316
    %v1619 = vpop.permute.xlu0 %1618
    %1622 = vset.pattern.permute.xlu0 0
    %1623 = vperm.xlu0 %1622, %v1317
    %v1624 = vpop.permute.xlu0 %1623
    %1627 = vset.pattern.permute.xlu0 0
    %1628 = vperm.xlu0 %1627, %v1318
    %v1629 = vpop.permute.xlu0 %1628
    %1632 = vset.pattern.permute.xlu0 0
    %1633 = vperm.xlu0 %1632, %v1319
    %v1634 = vpop.permute.xlu0 %1633
    %1637 = vset.pattern.permute.xlu0 0
    %1638 = vperm.xlu0 %1637, %v1320
    %v1639 = vpop.permute.xlu0 %1638
    %v1769 = vunpack.c.l.b16 %v1129
    %v1770 = vunpack.c.h.b16 %v1129
    %v1771 = vunpack.c.l.b16 %v1130
    %v1772 = vunpack.c.h.b16 %v1130
    %v1773 = vunpack.c.l.b16 %v1131
    %v1774 = vunpack.c.h.b16 %v1131
    %v1775 = vunpack.c.l.b16 %v1132
    %v1776 = vunpack.c.h.b16 %v1132
    %v1777 = vunpack.c.l.b16 %v1133
    %v1778 = vunpack.c.h.b16 %v1133
    %v1779 = vunpack.c.l.b16 %v1134
    %v1780 = vunpack.c.h.b16 %v1134
    %v1781 = vunpack.c.l.b16 %v1135
    %v1782 = vunpack.c.h.b16 %v1135
    %v1783 = vunpack.c.l.b16 %v1136
    %v1784 = vunpack.c.h.b16 %v1136
    %v1785 = vunpack.c.l.b16 %v1137
    %v1786 = vunpack.c.h.b16 %v1137
    %v1787 = vunpack.c.l.b16 %v1138
    %v1788 = vunpack.c.h.b16 %v1138
    %v1789 = vunpack.c.l.b16 %v1139
    %v1790 = vunpack.c.h.b16 %v1139
    %v1791 = vunpack.c.l.b16 %v1140
    %v1792 = vunpack.c.h.b16 %v1140
    %v1793 = vunpack.c.l.b16 %v1141
    %v1794 = vunpack.c.h.b16 %v1141
    %v1795 = vunpack.c.l.b16 %v1142
    %v1796 = vunpack.c.h.b16 %v1142
    %v1797 = vunpack.c.l.b16 %v1143
    %v1798 = vunpack.c.h.b16 %v1143
    %v1799 = vunpack.c.l.b16 %v1144
    %v1800 = vunpack.c.h.b16 %v1144
    %v1801 = vunpack.c.l.b16 %v1145
    %v1802 = vunpack.c.h.b16 %v1145
    %v1803 = vunpack.c.l.b16 %v1146
    %v1804 = vunpack.c.h.b16 %v1146
    %v1805 = vunpack.c.l.b16 %v1147
    %v1806 = vunpack.c.h.b16 %v1147
    %v1807 = vunpack.c.l.b16 %v1148
    %v1808 = vunpack.c.h.b16 %v1148
    %v1809 = vunpack.c.l.b16 %v1149
    %v1810 = vunpack.c.h.b16 %v1149
    %v1811 = vunpack.c.l.b16 %v1150
    %v1812 = vunpack.c.h.b16 %v1150
    %v1813 = vunpack.c.l.b16 %v1151
    %v1814 = vunpack.c.h.b16 %v1151
    %v1815 = vunpack.c.l.b16 %v1152
    %v1816 = vunpack.c.h.b16 %v1152
    %v1817 = vunpack.c.l.b16 %v1153
    %v1818 = vunpack.c.h.b16 %v1153
    %v1819 = vunpack.c.l.b16 %v1154
    %v1820 = vunpack.c.h.b16 %v1154
    %v1821 = vunpack.c.l.b16 %v1155
    %v1822 = vunpack.c.h.b16 %v1155
    %v1823 = vunpack.c.l.b16 %v1156
    %v1824 = vunpack.c.h.b16 %v1156
    %v1825 = vunpack.c.l.b16 %v1157
    %v1826 = vunpack.c.h.b16 %v1157
    %v1827 = vunpack.c.l.b16 %v1158
    %v1828 = vunpack.c.h.b16 %v1158
    %v1829 = vunpack.c.l.b16 %v1159
    %v1830 = vunpack.c.h.b16 %v1159
    %v1831 = vunpack.c.l.b16 %v1160
    %v1832 = vunpack.c.h.b16 %v1160
    %v1833 = vunpack.c.l.b16 %v1161
    %v1834 = vunpack.c.h.b16 %v1161
    %v1835 = vunpack.c.l.b16 %v1162
    %v1836 = vunpack.c.h.b16 %v1162
    %v1837 = vunpack.c.l.b16 %v1163
    %v1838 = vunpack.c.h.b16 %v1163
    %v1839 = vunpack.c.l.b16 %v1164
    %v1840 = vunpack.c.h.b16 %v1164
    %v1841 = vunpack.c.l.b16 %v1165
    %v1842 = vunpack.c.h.b16 %v1165
    %v1843 = vunpack.c.l.b16 %v1166
    %v1844 = vunpack.c.h.b16 %v1166
    %v1845 = vunpack.c.l.b16 %v1167
    %v1846 = vunpack.c.h.b16 %v1167
    %v1847 = vunpack.c.l.b16 %v1168
    %v1848 = vunpack.c.h.b16 %v1168
    %v1849 = vunpack.c.l.b16 %v1169
    %v1850 = vunpack.c.h.b16 %v1169
    %v1851 = vunpack.c.l.b16 %v1170
    %v1852 = vunpack.c.h.b16 %v1170
    %v1853 = vunpack.c.l.b16 %v1171
    %v1854 = vunpack.c.h.b16 %v1171
    %v1855 = vunpack.c.l.b16 %v1172
    %v1856 = vunpack.c.h.b16 %v1172
    %v1857 = vunpack.c.l.b16 %v1173
    %v1858 = vunpack.c.h.b16 %v1173
    %v1859 = vunpack.c.l.b16 %v1174
    %v1860 = vunpack.c.h.b16 %v1174
    %v1861 = vunpack.c.l.b16 %v1175
    %v1862 = vunpack.c.h.b16 %v1175
    %v1863 = vunpack.c.l.b16 %v1176
    %v1864 = vunpack.c.h.b16 %v1176
    %v1865 = vunpack.c.l.b16 %v1177
    %v1866 = vunpack.c.h.b16 %v1177
    %v1867 = vunpack.c.l.b16 %v1178
    %v1868 = vunpack.c.h.b16 %v1178
    %v1869 = vunpack.c.l.b16 %v1179
    %v1870 = vunpack.c.h.b16 %v1179
    %v1871 = vunpack.c.l.b16 %v1180
    %v1872 = vunpack.c.h.b16 %v1180
    %v1873 = vunpack.c.l.b16 %v1181
    %v1874 = vunpack.c.h.b16 %v1181
    %v1875 = vunpack.c.l.b16 %v1182
    %v1876 = vunpack.c.h.b16 %v1182
    %v1877 = vunpack.c.l.b16 %v1183
    %v1878 = vunpack.c.h.b16 %v1183
    %v1879 = vunpack.c.l.b16 %v1184
    %v1880 = vunpack.c.h.b16 %v1184
    %v1881 = vunpack.c.l.b16 %v1185
    %v1882 = vunpack.c.h.b16 %v1185
    %v1883 = vunpack.c.l.b16 %v1186
    %v1884 = vunpack.c.h.b16 %v1186
    %v1885 = vunpack.c.l.b16 %v1187
    %v1886 = vunpack.c.h.b16 %v1187
    %v1887 = vunpack.c.l.b16 %v1188
    %v1888 = vunpack.c.h.b16 %v1188
    %v1889 = vunpack.c.l.b16 %v1189
    %v1890 = vunpack.c.h.b16 %v1189
    %v1891 = vunpack.c.l.b16 %v1190
    %v1892 = vunpack.c.h.b16 %v1190
    %v1893 = vunpack.c.l.b16 %v1191
    %v1894 = vunpack.c.h.b16 %v1191
    %v1895 = vunpack.c.l.b16 %v1192
    %v1896 = vunpack.c.h.b16 %v1192
    %v1897 = vunpack.c.l.b16 %v1193
    %v1898 = vunpack.c.h.b16 %v1193
    %v1899 = vunpack.c.l.b16 %v1194
    %v1900 = vunpack.c.h.b16 %v1194
    %v1901 = vunpack.c.l.b16 %v1195
    %v1902 = vunpack.c.h.b16 %v1195
    %v1903 = vunpack.c.l.b16 %v1196
    %v1904 = vunpack.c.h.b16 %v1196
    %v1905 = vunpack.c.l.b16 %v1197
    %v1906 = vunpack.c.h.b16 %v1197
    %v1907 = vunpack.c.l.b16 %v1198
    %v1908 = vunpack.c.h.b16 %v1198
    %v1909 = vunpack.c.l.b16 %v1199
    %v1910 = vunpack.c.h.b16 %v1199
    %v1911 = vunpack.c.l.b16 %v1200
    %v1912 = vunpack.c.h.b16 %v1200
    %v1913 = vunpack.c.l.b16 %v1201
    %v1914 = vunpack.c.h.b16 %v1201
    %v1915 = vunpack.c.l.b16 %v1202
    %v1916 = vunpack.c.h.b16 %v1202
    %v1917 = vunpack.c.l.b16 %v1203
    %v1918 = vunpack.c.h.b16 %v1203
    %v1919 = vunpack.c.l.b16 %v1204
    %v1920 = vunpack.c.h.b16 %v1204
    %v1921 = vunpack.c.l.b16 %v1205
    %v1922 = vunpack.c.h.b16 %v1205
    %v1923 = vunpack.c.l.b16 %v1206
    %v1924 = vunpack.c.h.b16 %v1206
    %v1925 = vunpack.c.l.b16 %v1207
    %v1926 = vunpack.c.h.b16 %v1207
    %v1927 = vunpack.c.l.b16 %v1208
    %v1928 = vunpack.c.h.b16 %v1208
    %v1929 = vunpack.c.l.b16 %v1209
    %v1930 = vunpack.c.h.b16 %v1209
    %v1931 = vunpack.c.l.b16 %v1210
    %v1932 = vunpack.c.h.b16 %v1210
    %v1933 = vunpack.c.l.b16 %v1211
    %v1934 = vunpack.c.h.b16 %v1211
    %v1935 = vunpack.c.l.b16 %v1212
    %v1936 = vunpack.c.h.b16 %v1212
    %v1937 = vunpack.c.l.b16 %v1213
    %v1938 = vunpack.c.h.b16 %v1213
    %v1939 = vunpack.c.l.b16 %v1214
    %v1940 = vunpack.c.h.b16 %v1214
    %v1941 = vunpack.c.l.b16 %v1215
    %v1942 = vunpack.c.h.b16 %v1215
    %v1943 = vunpack.c.l.b16 %v1216
    %v1944 = vunpack.c.h.b16 %v1216
    %v1945 = vunpack.c.l.b16 %v1217
    %v1946 = vunpack.c.h.b16 %v1217
    %v1947 = vunpack.c.l.b16 %v1218
    %v1948 = vunpack.c.h.b16 %v1218
    %v1949 = vunpack.c.l.b16 %v1219
    %v1950 = vunpack.c.h.b16 %v1219
    %v1951 = vunpack.c.l.b16 %v1220
    %v1952 = vunpack.c.h.b16 %v1220
    %v1953 = vunpack.c.l.b16 %v1221
    %v1954 = vunpack.c.h.b16 %v1221
    %v1955 = vunpack.c.l.b16 %v1222
    %v1956 = vunpack.c.h.b16 %v1222
    %v1957 = vunpack.c.l.b16 %v1223
    %v1958 = vunpack.c.h.b16 %v1223
    %v1959 = vunpack.c.l.b16 %v1224
    %v1960 = vunpack.c.h.b16 %v1224
    %v1961 = vunpack.c.l.b16 %v1225
    %v1962 = vunpack.c.h.b16 %v1225
    %v1963 = vunpack.c.l.b16 %v1226
    %v1964 = vunpack.c.h.b16 %v1226
    %v1965 = vunpack.c.l.b16 %v1227
    %v1966 = vunpack.c.h.b16 %v1227
    %v1967 = vunpack.c.l.b16 %v1228
    %v1968 = vunpack.c.h.b16 %v1228
    %v1969 = vunpack.c.l.b16 %v1229
    %v1970 = vunpack.c.h.b16 %v1229
    %v1971 = vunpack.c.l.b16 %v1230
    %v1972 = vunpack.c.h.b16 %v1230
    %v1973 = vunpack.c.l.b16 %v1231
    %v1974 = vunpack.c.h.b16 %v1231
    %v1975 = vunpack.c.l.b16 %v1232
    %v1976 = vunpack.c.h.b16 %v1232
    %v1977 = vunpack.c.l.b16 %v1233
    %v1978 = vunpack.c.h.b16 %v1233
    %v1979 = vunpack.c.l.b16 %v1234
    %v1980 = vunpack.c.h.b16 %v1234
    %v1981 = vunpack.c.l.b16 %v1235
    %v1982 = vunpack.c.h.b16 %v1235
    %v1983 = vunpack.c.l.b16 %v1236
    %v1984 = vunpack.c.h.b16 %v1236
    %v1985 = vunpack.c.l.b16 %v1237
    %v1986 = vunpack.c.h.b16 %v1237
    %v1987 = vunpack.c.l.b16 %v1238
    %v1988 = vunpack.c.h.b16 %v1238
    %v1989 = vunpack.c.l.b16 %v1239
    %v1990 = vunpack.c.h.b16 %v1239
    %v1991 = vunpack.c.l.b16 %v1240
    %v1992 = vunpack.c.h.b16 %v1240
    %v1993 = vunpack.c.l.b16 %v1241
    %v1994 = vunpack.c.h.b16 %v1241
    %v1995 = vunpack.c.l.b16 %v1242
    %v1996 = vunpack.c.h.b16 %v1242
    %v1997 = vunpack.c.l.b16 %v1243
    %v1998 = vunpack.c.h.b16 %v1243
    %v1999 = vunpack.c.l.b16 %v1244
    %v2000 = vunpack.c.h.b16 %v1244
    %v2001 = vunpack.c.l.b16 %v1245
    %v2002 = vunpack.c.h.b16 %v1245
    %v2003 = vunpack.c.l.b16 %v1246
    %v2004 = vunpack.c.h.b16 %v1246
    %v2005 = vunpack.c.l.b16 %v1247
    %v2006 = vunpack.c.h.b16 %v1247
    %v2007 = vunpack.c.l.b16 %v1248
    %v2008 = vunpack.c.h.b16 %v1248
    %v2009 = vunpack.c.l.b16 %v1249
    %v2010 = vunpack.c.h.b16 %v1249
    %v2011 = vunpack.c.l.b16 %v1250
    %v2012 = vunpack.c.h.b16 %v1250
    %v2013 = vunpack.c.l.b16 %v1251
    %v2014 = vunpack.c.h.b16 %v1251
    %v2015 = vunpack.c.l.b16 %v1252
    %v2016 = vunpack.c.h.b16 %v1252
    %v2017 = vunpack.c.l.b16 %v1253
    %v2018 = vunpack.c.h.b16 %v1253
    %v2019 = vunpack.c.l.b16 %v1254
    %v2020 = vunpack.c.h.b16 %v1254
    %v2021 = vunpack.c.l.b16 %v1255
    %v2022 = vunpack.c.h.b16 %v1255
    %v2023 = vunpack.c.l.b16 %v1256
    %v2024 = vunpack.c.h.b16 %v1256
    %v2025 = vpack.c.b16 %v1773, %v1769
    %v2026 = vpack.c.b16 %v1774, %v1770
    %v2027 = vpack.c.b16 %v1775, %v1771
    %v2028 = vpack.c.b16 %v1776, %v1772
    %v2029 = vpack.c.b16 %v1781, %v1777
    %v2030 = vpack.c.b16 %v1782, %v1778
    %v2031 = vpack.c.b16 %v1783, %v1779
    %v2032 = vpack.c.b16 %v1784, %v1780
    %v2033 = vpack.c.b16 %v1789, %v1785
    %v2034 = vpack.c.b16 %v1790, %v1786
    %v2035 = vpack.c.b16 %v1791, %v1787
    %v2036 = vpack.c.b16 %v1792, %v1788
    %v2037 = vpack.c.b16 %v1797, %v1793
    %v2038 = vpack.c.b16 %v1798, %v1794
    %v2039 = vpack.c.b16 %v1799, %v1795
    %v2040 = vpack.c.b16 %v1800, %v1796
    %v2041 = vpack.c.b16 %v1805, %v1801
    %v2042 = vpack.c.b16 %v1806, %v1802
    %v2043 = vpack.c.b16 %v1807, %v1803
    %v2044 = vpack.c.b16 %v1808, %v1804
    %v2045 = vpack.c.b16 %v1813, %v1809
    %v2046 = vpack.c.b16 %v1814, %v1810
    %v2047 = vpack.c.b16 %v1815, %v1811
    %v2048 = vpack.c.b16 %v1816, %v1812
    %v2049 = vpack.c.b16 %v1821, %v1817
    %v2050 = vpack.c.b16 %v1822, %v1818
    %v2051 = vpack.c.b16 %v1823, %v1819
    %v2052 = vpack.c.b16 %v1824, %v1820
    %v2053 = vpack.c.b16 %v1829, %v1825
    %v2054 = vpack.c.b16 %v1830, %v1826
    %v2055 = vpack.c.b16 %v1831, %v1827
    %v2056 = vpack.c.b16 %v1832, %v1828
    %v2057 = vpack.c.b16 %v1837, %v1833
    %v2058 = vpack.c.b16 %v1838, %v1834
    %v2059 = vpack.c.b16 %v1839, %v1835
    %v2060 = vpack.c.b16 %v1840, %v1836
    %v2061 = vpack.c.b16 %v1845, %v1841
    %v2062 = vpack.c.b16 %v1846, %v1842
    %v2063 = vpack.c.b16 %v1847, %v1843
    %v2064 = vpack.c.b16 %v1848, %v1844
    %v2065 = vpack.c.b16 %v1853, %v1849
    %v2066 = vpack.c.b16 %v1854, %v1850
    %v2067 = vpack.c.b16 %v1855, %v1851
    %v2068 = vpack.c.b16 %v1856, %v1852
    %v2069 = vpack.c.b16 %v1861, %v1857
    %v2070 = vpack.c.b16 %v1862, %v1858
    %v2071 = vpack.c.b16 %v1863, %v1859
    %v2072 = vpack.c.b16 %v1864, %v1860
    %v2073 = vpack.c.b16 %v1869, %v1865
    %v2074 = vpack.c.b16 %v1870, %v1866
    %v2075 = vpack.c.b16 %v1871, %v1867
    %v2076 = vpack.c.b16 %v1872, %v1868
    %v2077 = vpack.c.b16 %v1877, %v1873
    %v2078 = vpack.c.b16 %v1878, %v1874
    %v2079 = vpack.c.b16 %v1879, %v1875
    %v2080 = vpack.c.b16 %v1880, %v1876
    %v2081 = vpack.c.b16 %v1885, %v1881
    %v2082 = vpack.c.b16 %v1886, %v1882
    %v2083 = vpack.c.b16 %v1887, %v1883
    %v2084 = vpack.c.b16 %v1888, %v1884
    %v2085 = vpack.c.b16 %v1893, %v1889
    %v2086 = vpack.c.b16 %v1894, %v1890
    %v2087 = vpack.c.b16 %v1895, %v1891
    %v2088 = vpack.c.b16 %v1896, %v1892
    %v2089 = vpack.c.b16 %v1901, %v1897
    %v2090 = vpack.c.b16 %v1902, %v1898
    %v2091 = vpack.c.b16 %v1903, %v1899
    %v2092 = vpack.c.b16 %v1904, %v1900
    %v2093 = vpack.c.b16 %v1909, %v1905
    %v2094 = vpack.c.b16 %v1910, %v1906
    %v2095 = vpack.c.b16 %v1911, %v1907
    %v2096 = vpack.c.b16 %v1912, %v1908
    %v2097 = vpack.c.b16 %v1917, %v1913
    %v2098 = vpack.c.b16 %v1918, %v1914
    %v2099 = vpack.c.b16 %v1919, %v1915
    %v2100 = vpack.c.b16 %v1920, %v1916
    %v2101 = vpack.c.b16 %v1925, %v1921
    %v2102 = vpack.c.b16 %v1926, %v1922
    %v2103 = vpack.c.b16 %v1927, %v1923
    %v2104 = vpack.c.b16 %v1928, %v1924
    %v2105 = vpack.c.b16 %v1933, %v1929
    %v2106 = vpack.c.b16 %v1934, %v1930
    %v2107 = vpack.c.b16 %v1935, %v1931
    %v2108 = vpack.c.b16 %v1936, %v1932
    %v2109 = vpack.c.b16 %v1941, %v1937
    %v2110 = vpack.c.b16 %v1942, %v1938
    %v2111 = vpack.c.b16 %v1943, %v1939
    %v2112 = vpack.c.b16 %v1944, %v1940
    %v2113 = vpack.c.b16 %v1949, %v1945
    %v2114 = vpack.c.b16 %v1950, %v1946
    %v2115 = vpack.c.b16 %v1951, %v1947
    %v2116 = vpack.c.b16 %v1952, %v1948
    %v2117 = vpack.c.b16 %v1957, %v1953
    %v2118 = vpack.c.b16 %v1958, %v1954
    %v2119 = vpack.c.b16 %v1959, %v1955
    %v2120 = vpack.c.b16 %v1960, %v1956
    %v2121 = vpack.c.b16 %v1965, %v1961
    %v2122 = vpack.c.b16 %v1966, %v1962
    %v2123 = vpack.c.b16 %v1967, %v1963
    %v2124 = vpack.c.b16 %v1968, %v1964
    %v2125 = vpack.c.b16 %v1973, %v1969
    %v2126 = vpack.c.b16 %v1974, %v1970
    %v2127 = vpack.c.b16 %v1975, %v1971
    %v2128 = vpack.c.b16 %v1976, %v1972
    %v2129 = vpack.c.b16 %v1981, %v1977
    %v2130 = vpack.c.b16 %v1982, %v1978
    %v2131 = vpack.c.b16 %v1983, %v1979
    %v2132 = vpack.c.b16 %v1984, %v1980
    %v2133 = vpack.c.b16 %v1989, %v1985
    %v2134 = vpack.c.b16 %v1990, %v1986
    %v2135 = vpack.c.b16 %v1991, %v1987
    %v2136 = vpack.c.b16 %v1992, %v1988
    %v2137 = vpack.c.b16 %v1997, %v1993
    %v2138 = vpack.c.b16 %v1998, %v1994
    %v2139 = vpack.c.b16 %v1999, %v1995
    %v2140 = vpack.c.b16 %v2000, %v1996
    %v2141 = vpack.c.b16 %v2005, %v2001
    %v2142 = vpack.c.b16 %v2006, %v2002
    %v2143 = vpack.c.b16 %v2007, %v2003
    %v2144 = vpack.c.b16 %v2008, %v2004
    %v2145 = vpack.c.b16 %v2013, %v2009
    %v2146 = vpack.c.b16 %v2014, %v2010
    %v2147 = vpack.c.b16 %v2015, %v2011
    %v2148 = vpack.c.b16 %v2016, %v2012
    %v2149 = vpack.c.b16 %v2021, %v2017
    %v2150 = vpack.c.b16 %v2022, %v2018
    %v2151 = vpack.c.b16 %v2023, %v2019
    %v2152 = vpack.c.b16 %v2024, %v2020
    %2281 = vmatprep.subr.bf16.mxu0 0
    %2282 = vmatpush1.bf16.msra.mxu0 %v1104
    %2283 = vmatprep.subr.bf16.mxu0 0
    %2284 = vmatpush1.bf16.msra.mxu0 %v1103
    %2285 = vmatprep.subr.bf16.mxu0 0
    %2286 = vmatpush1.bf16.msra.mxu0 %v1102
    %2287 = vmatprep.subr.bf16.mxu0 0
    %2288 = vmatpush1.bf16.msra.mxu0 %v1101
    %2289 = vmatprep.subr.bf16.mxu0 0
    %2290 = vmatpush1.bf16.msra.mxu0 %v1100
    %2291 = vmatprep.subr.bf16.mxu0 0
    %2292 = vmatpush1.bf16.msra.mxu0 %v1099
    %2293 = vmatprep.subr.bf16.mxu0 0
    %2294 = vmatpush1.bf16.msra.mxu0 %v1098
    %2295 = vmatprep.subr.bf16.mxu0 0
    %2296 = vmatpush1.bf16.msra.mxu0 %v1097
    %2297 = vmatprep.subr.bf16.mxu0 0
    %2298 = vmatpush2.bf16.msra.mxu0 %v1112
    %2299 = vmatprep.subr.bf16.mxu0 0
    %2300 = vmatpush2.bf16.msra.mxu0 %v1111
    %2301 = vmatprep.subr.bf16.mxu0 0
    %2302 = vmatpush2.bf16.msra.mxu0 %v1110
    %2303 = vmatprep.subr.bf16.mxu0 0
    %2304 = vmatpush2.bf16.msra.mxu0 %v1109
    %2305 = vmatprep.subr.bf16.mxu0 0
    %2306 = vmatpush2.bf16.msra.mxu0 %v1108
    %2307 = vmatprep.subr.bf16.mxu0 0
    %2308 = vmatpush2.bf16.msra.mxu0 %v1107
    %2309 = vmatprep.subr.bf16.mxu0 0
    %2310 = vmatpush2.bf16.msra.mxu0 %v1106
    %2311 = vmatprep.subr.bf16.mxu0 0
    %2312 = vmatpush2.bf16.msra.mxu0 %v1105
    %2313 = vmatprep.mubr.bf16.mxu0 %v2026
    %2314 = vmatmul.mubr.bf16.gmra.mxu0 %v2025
    %v2315 = vpop.f32.mrf.mxu0
    %v2316 = vadd.f32 %v1324, %v2315
    %v2317 = vpop.f32.mrf.mxu0
    %v2318 = vpop.f32.mrf.mxu0
    %v2319 = vadd.f32 %v1329, %v2318
    %v2320 = vpop.f32.mrf.mxu0
    %2321 = vmatprep.mubr.bf16.mxu0 %v2030
    %2322 = vmatmul.mubr.bf16.gmra.mxu0 %v2029
    %v2323 = vpop.f32.mrf.mxu0
    %v2324 = vadd.f32 %v1334, %v2323
    %v2325 = vpop.f32.mrf.mxu0
    %v2326 = vpop.f32.mrf.mxu0
    %v2327 = vadd.f32 %v1339, %v2326
    %v2328 = vpop.f32.mrf.mxu0
    %2329 = vmatprep.mubr.bf16.mxu0 %v2034
    %2330 = vmatmul.mubr.bf16.gmra.mxu0 %v2033
    %v2331 = vpop.f32.mrf.mxu0
    %v2332 = vadd.f32 %v1344, %v2331
    %v2333 = vpop.f32.mrf.mxu0
    %v2334 = vpop.f32.mrf.mxu0
    %v2335 = vadd.f32 %v1349, %v2334
    %v2336 = vpop.f32.mrf.mxu0
    %2337 = vmatprep.mubr.bf16.mxu0 %v2038
    %2338 = vmatmul.mubr.bf16.gmra.mxu0 %v2037
    %v2339 = vpop.f32.mrf.mxu0
    %v2340 = vadd.f32 %v1354, %v2339
    %v2341 = vpop.f32.mrf.mxu0
    %v2342 = vpop.f32.mrf.mxu0
    %v2343 = vadd.f32 %v1359, %v2342
    %v2344 = vpop.f32.mrf.mxu0
    %2345 = vmatprep.mubr.bf16.mxu0 %v2042
    %2346 = vmatmul.mubr.bf16.gmra.mxu0 %v2041
    %v2347 = vpop.f32.mrf.mxu0
    %v2348 = vadd.f32 %v1364, %v2347
    %v2349 = vpop.f32.mrf.mxu0
    %v2350 = vpop.f32.mrf.mxu0
    %v2351 = vadd.f32 %v1369, %v2350
    %v2352 = vpop.f32.mrf.mxu0
    %2353 = vmatprep.mubr.bf16.mxu0 %v2046
    %2354 = vmatmul.mubr.bf16.gmra.mxu0 %v2045
    %v2355 = vpop.f32.mrf.mxu0
    %v2356 = vadd.f32 %v1374, %v2355
    %v2357 = vpop.f32.mrf.mxu0
    %v2358 = vpop.f32.mrf.mxu0
    %v2359 = vadd.f32 %v1379, %v2358
    %v2360 = vpop.f32.mrf.mxu0
    %2361 = vmatprep.mubr.bf16.mxu0 %v2050
    %2362 = vmatmul.mubr.bf16.gmra.mxu0 %v2049
    %v2363 = vpop.f32.mrf.mxu0
    %v2364 = vadd.f32 %v1384, %v2363
    %v2365 = vpop.f32.mrf.mxu0
    %v2366 = vpop.f32.mrf.mxu0
    %v2367 = vadd.f32 %v1389, %v2366
    %v2368 = vpop.f32.mrf.mxu0
    %2369 = vmatprep.mubr.bf16.mxu0 %v2054
    %2370 = vmatmul.mubr.bf16.gmra.mxu0 %v2053
    %v2371 = vpop.f32.mrf.mxu0
    %v2372 = vadd.f32 %v1394, %v2371
    %v2373 = vpop.f32.mrf.mxu0
    %v2374 = vpop.f32.mrf.mxu0
    %v2375 = vadd.f32 %v1399, %v2374
    %v2376 = vpop.f32.mrf.mxu0
    %2377 = vmatprep.mubr.bf16.mxu0 %v2058
    %2378 = vmatmul.mubr.bf16.gmra.mxu0 %v2057
    %v2379 = vpop.f32.mrf.mxu0
    %v2380 = vadd.f32 %v1404, %v2379
    %v2381 = vpop.f32.mrf.mxu0
    %v2382 = vpop.f32.mrf.mxu0
    %v2383 = vadd.f32 %v1409, %v2382
    %v2384 = vpop.f32.mrf.mxu0
    %2385 = vmatprep.mubr.bf16.mxu0 %v2062
    %2386 = vmatmul.mubr.bf16.gmra.mxu0 %v2061
    %v2387 = vpop.f32.mrf.mxu0
    %v2388 = vadd.f32 %v1414, %v2387
    %v2389 = vpop.f32.mrf.mxu0
    %v2390 = vpop.f32.mrf.mxu0
    %v2391 = vadd.f32 %v1419, %v2390
    %v2392 = vpop.f32.mrf.mxu0
    %2393 = vmatprep.mubr.bf16.mxu0 %v2066
    %2394 = vmatmul.mubr.bf16.gmra.mxu0 %v2065
    %v2395 = vpop.f32.mrf.mxu0
    %v2396 = vadd.f32 %v1424, %v2395
    %v2397 = vpop.f32.mrf.mxu0
    %v2398 = vpop.f32.mrf.mxu0
    %v2399 = vadd.f32 %v1429, %v2398
    %v2400 = vpop.f32.mrf.mxu0
    %2401 = vmatprep.mubr.bf16.mxu0 %v2070
    %2402 = vmatmul.mubr.bf16.gmra.mxu0 %v2069
    %v2403 = vpop.f32.mrf.mxu0
    %v2404 = vadd.f32 %v1434, %v2403
    %v2405 = vpop.f32.mrf.mxu0
    %v2406 = vpop.f32.mrf.mxu0
    %v2407 = vadd.f32 %v1439, %v2406
    %v2408 = vpop.f32.mrf.mxu0
    %2409 = vmatprep.mubr.bf16.mxu0 %v2074
    %2410 = vmatmul.mubr.bf16.gmra.mxu0 %v2073
    %v2411 = vpop.f32.mrf.mxu0
    %v2412 = vadd.f32 %v1444, %v2411
    %v2413 = vpop.f32.mrf.mxu0
    %v2414 = vpop.f32.mrf.mxu0
    %v2415 = vadd.f32 %v1449, %v2414
    %v2416 = vpop.f32.mrf.mxu0
    %2417 = vmatprep.mubr.bf16.mxu0 %v2078
    %2418 = vmatmul.mubr.bf16.gmra.mxu0 %v2077
    %v2419 = vpop.f32.mrf.mxu0
    %v2420 = vadd.f32 %v1454, %v2419
    %v2421 = vpop.f32.mrf.mxu0
    %v2422 = vpop.f32.mrf.mxu0
    %v2423 = vadd.f32 %v1459, %v2422
    %v2424 = vpop.f32.mrf.mxu0
    %2425 = vmatprep.mubr.bf16.mxu0 %v2082
    %2426 = vmatmul.mubr.bf16.gmra.mxu0 %v2081
    %v2427 = vpop.f32.mrf.mxu0
    %v2428 = vadd.f32 %v1464, %v2427
    %v2429 = vpop.f32.mrf.mxu0
    %v2430 = vpop.f32.mrf.mxu0
    %v2431 = vadd.f32 %v1469, %v2430
    %v2432 = vpop.f32.mrf.mxu0
    %2433 = vmatprep.mubr.bf16.mxu0 %v2086
    %2434 = vmatmul.mubr.bf16.gmra.mxu0 %v2085
    %v2435 = vpop.f32.mrf.mxu0
    %v2436 = vadd.f32 %v1474, %v2435
    %v2437 = vpop.f32.mrf.mxu0
    %v2438 = vpop.f32.mrf.mxu0
    %v2439 = vadd.f32 %v1479, %v2438
    %v2440 = vpop.f32.mrf.mxu0
    %2441 = vmatprep.mubr.bf16.mxu0 %v2090
    %2442 = vmatmul.mubr.bf16.gmra.mxu0 %v2089
    %v2443 = vpop.f32.mrf.mxu0
    %v2444 = vadd.f32 %v1484, %v2443
    %v2445 = vpop.f32.mrf.mxu0
    %v2446 = vpop.f32.mrf.mxu0
    %v2447 = vadd.f32 %v1489, %v2446
    %v2448 = vpop.f32.mrf.mxu0
    %2449 = vmatprep.mubr.bf16.mxu0 %v2094
    %2450 = vmatmul.mubr.bf16.gmra.mxu0 %v2093
    %v2451 = vpop.f32.mrf.mxu0
    %v2452 = vadd.f32 %v1494, %v2451
    %v2453 = vpop.f32.mrf.mxu0
    %v2454 = vpop.f32.mrf.mxu0
    %v2455 = vadd.f32 %v1499, %v2454
    %v2456 = vpop.f32.mrf.mxu0
    %2457 = vmatprep.mubr.bf16.mxu0 %v2098
    %2458 = vmatmul.mubr.bf16.gmra.mxu0 %v2097
    %v2459 = vpop.f32.mrf.mxu0
    %v2460 = vadd.f32 %v1504, %v2459
    %v2461 = vpop.f32.mrf.mxu0
    %v2462 = vpop.f32.mrf.mxu0
    %v2463 = vadd.f32 %v1509, %v2462
    %v2464 = vpop.f32.mrf.mxu0
    %2465 = vmatprep.mubr.bf16.mxu0 %v2102
    %2466 = vmatmul.mubr.bf16.gmra.mxu0 %v2101
    %v2467 = vpop.f32.mrf.mxu0
    %v2468 = vadd.f32 %v1514, %v2467
    %v2469 = vpop.f32.mrf.mxu0
    %v2470 = vpop.f32.mrf.mxu0
    %v2471 = vadd.f32 %v1519, %v2470
    %v2472 = vpop.f32.mrf.mxu0
    %2473 = vmatprep.mubr.bf16.mxu0 %v2106
    %2474 = vmatmul.mubr.bf16.gmra.mxu0 %v2105
    %v2475 = vpop.f32.mrf.mxu0
    %v2476 = vadd.f32 %v1524, %v2475
    %v2477 = vpop.f32.mrf.mxu0
    %v2478 = vpop.f32.mrf.mxu0
    %v2479 = vadd.f32 %v1529, %v2478
    %v2480 = vpop.f32.mrf.mxu0
    %2481 = vmatprep.mubr.bf16.mxu0 %v2110
    %2482 = vmatmul.mubr.bf16.gmra.mxu0 %v2109
    %v2483 = vpop.f32.mrf.mxu0
    %v2484 = vadd.f32 %v1534, %v2483
    %v2485 = vpop.f32.mrf.mxu0
    %v2486 = vpop.f32.mrf.mxu0
    %v2487 = vadd.f32 %v1539, %v2486
    %v2488 = vpop.f32.mrf.mxu0
    %2489 = vmatprep.mubr.bf16.mxu0 %v2114
    %2490 = vmatmul.mubr.bf16.gmra.mxu0 %v2113
    %v2491 = vpop.f32.mrf.mxu0
    %v2492 = vadd.f32 %v1544, %v2491
    %v2493 = vpop.f32.mrf.mxu0
    %v2494 = vpop.f32.mrf.mxu0
    %v2495 = vadd.f32 %v1549, %v2494
    %v2496 = vpop.f32.mrf.mxu0
    %2497 = vmatprep.mubr.bf16.mxu0 %v2118
    %2498 = vmatmul.mubr.bf16.gmra.mxu0 %v2117
    %v2499 = vpop.f32.mrf.mxu0
    %v2500 = vadd.f32 %v1554, %v2499
    %v2501 = vpop.f32.mrf.mxu0
    %v2502 = vpop.f32.mrf.mxu0
    %v2503 = vadd.f32 %v1559, %v2502
    %v2504 = vpop.f32.mrf.mxu0
    %2505 = vmatprep.mubr.bf16.mxu0 %v2122
    %2506 = vmatmul.mubr.bf16.gmra.mxu0 %v2121
    %v2507 = vpop.f32.mrf.mxu0
    %v2508 = vadd.f32 %v1564, %v2507
    %v2509 = vpop.f32.mrf.mxu0
    %v2510 = vpop.f32.mrf.mxu0
    %v2511 = vadd.f32 %v1569, %v2510
    %v2512 = vpop.f32.mrf.mxu0
    %2513 = vmatprep.mubr.bf16.mxu0 %v2126
    %2514 = vmatmul.mubr.bf16.gmra.mxu0 %v2125
    %v2515 = vpop.f32.mrf.mxu0
    %v2516 = vadd.f32 %v1574, %v2515
    %v2517 = vpop.f32.mrf.mxu0
    %v2518 = vpop.f32.mrf.mxu0
    %v2519 = vadd.f32 %v1579, %v2518
    %v2520 = vpop.f32.mrf.mxu0
    %2521 = vmatprep.mubr.bf16.mxu0 %v2130
    %2522 = vmatmul.mubr.bf16.gmra.mxu0 %v2129
    %v2523 = vpop.f32.mrf.mxu0
    %v2524 = vadd.f32 %v1584, %v2523
    %v2525 = vpop.f32.mrf.mxu0
    %v2526 = vpop.f32.mrf.mxu0
    %v2527 = vadd.f32 %v1589, %v2526
    %v2528 = vpop.f32.mrf.mxu0
    %2529 = vmatprep.mubr.bf16.mxu0 %v2134
    %2530 = vmatmul.mubr.bf16.gmra.mxu0 %v2133
    %v2531 = vpop.f32.mrf.mxu0
    %v2532 = vadd.f32 %v1594, %v2531
    %v2533 = vpop.f32.mrf.mxu0
    %v2534 = vpop.f32.mrf.mxu0
    %v2535 = vadd.f32 %v1599, %v2534
    %v2536 = vpop.f32.mrf.mxu0
    %2537 = vmatprep.mubr.bf16.mxu0 %v2138
    %2538 = vmatmul.mubr.bf16.gmra.mxu0 %v2137
    %v2539 = vpop.f32.mrf.mxu0
    %v2540 = vadd.f32 %v1604, %v2539
    %v2541 = vpop.f32.mrf.mxu0
    %v2542 = vpop.f32.mrf.mxu0
    %v2543 = vadd.f32 %v1609, %v2542
    %v2544 = vpop.f32.mrf.mxu0
    %2545 = vmatprep.mubr.bf16.mxu0 %v2142
    %2546 = vmatmul.mubr.bf16.gmra.mxu0 %v2141
    %v2547 = vpop.f32.mrf.mxu0
    %v2548 = vadd.f32 %v1614, %v2547
    %v2549 = vpop.f32.mrf.mxu0
    %v2550 = vpop.f32.mrf.mxu0
    %v2551 = vadd.f32 %v1619, %v2550
    %v2552 = vpop.f32.mrf.mxu0
    %2553 = vmatprep.mubr.bf16.mxu0 %v2146
    %2554 = vmatmul.mubr.bf16.gmra.mxu0 %v2145
    %v2555 = vpop.f32.mrf.mxu0
    %v2556 = vadd.f32 %v1624, %v2555
    %v2557 = vpop.f32.mrf.mxu0
    %v2558 = vpop.f32.mrf.mxu0
    %v2559 = vadd.f32 %v1629, %v2558
    %v2560 = vpop.f32.mrf.mxu0
    %2561 = vmatprep.mubr.bf16.mxu0 %v2150
    %2562 = vmatmul.mubr.bf16.gmra.mxu0 %v2149
    %v2563 = vpop.f32.mrf.mxu0
    %v2564 = vadd.f32 %v1634, %v2563
    %v2565 = vpop.f32.mrf.mxu0
    %v2566 = vpop.f32.mrf.mxu0
    %v2567 = vadd.f32 %v1639, %v2566
    %v2568 = vpop.f32.mrf.mxu0
    %2569 = vdwg.mxu0
    %2570 = vmatprep.subr.bf16.mxu0 0
    %2571 = vmatpush1.bf16.msra.mxu0 %v1120
    %2572 = vmatprep.subr.bf16.mxu0 0
    %2573 = vmatpush1.bf16.msra.mxu0 %v1119
    %2574 = vmatprep.subr.bf16.mxu0 0
    %2575 = vmatpush1.bf16.msra.mxu0 %v1118
    %2576 = vmatprep.subr.bf16.mxu0 0
    %2577 = vmatpush1.bf16.msra.mxu0 %v1117
    %2578 = vmatprep.subr.bf16.mxu0 0
    %2579 = vmatpush1.bf16.msra.mxu0 %v1116
    %2580 = vmatprep.subr.bf16.mxu0 0
    %2581 = vmatpush1.bf16.msra.mxu0 %v1115
    %2582 = vmatprep.subr.bf16.mxu0 0
    %2583 = vmatpush1.bf16.msra.mxu0 %v1114
    %2584 = vmatprep.subr.bf16.mxu0 0
    %2585 = vmatpush1.bf16.msra.mxu0 %v1113
    %2586 = vmatprep.subr.bf16.mxu0 0
    %2587 = vmatpush2.bf16.msra.mxu0 %v1128
    %2588 = vmatprep.subr.bf16.mxu0 0
    %2589 = vmatpush2.bf16.msra.mxu0 %v1127
    %2590 = vmatprep.subr.bf16.mxu0 0
    %2591 = vmatpush2.bf16.msra.mxu0 %v1126
    %2592 = vmatprep.subr.bf16.mxu0 0
    %2593 = vmatpush2.bf16.msra.mxu0 %v1125
    %2594 = vmatprep.subr.bf16.mxu0 0
    %2595 = vmatpush2.bf16.msra.mxu0 %v1124
    %2596 = vmatprep.subr.bf16.mxu0 0
    %2597 = vmatpush2.bf16.msra.mxu0 %v1123
    %2598 = vmatprep.subr.bf16.mxu0 0
    %2599 = vmatpush2.bf16.msra.mxu0 %v1122
    %2600 = vmatprep.subr.bf16.mxu0 0
    %2601 = vmatpush2.bf16.msra.mxu0 %v1121
    %2602 = vmatprep.mubr.bf16.mxu0 %v2028
    %2603 = vmatmul.mubr.bf16.gmra.mxu0 %v2027
    %v2604 = vpop.f32.mrf.mxu0
    %v2605 = vadd.f32 %v2316, %v2604
    %v2606 = vpop.f32.mrf.mxu0
    %v2607 = vpop.f32.mrf.mxu0
    %v2608 = vadd.f32 %v2319, %v2607
    %v2609 = vpop.f32.mrf.mxu0
    %2610 = vmatprep.mubr.bf16.mxu0 %v2032
    %2611 = vmatmul.mubr.bf16.gmra.mxu0 %v2031
    %v2612 = vpop.f32.mrf.mxu0
    %v2613 = vadd.f32 %v2324, %v2612
    %v2614 = vpop.f32.mrf.mxu0
    %v2615 = vpop.f32.mrf.mxu0
    %v2616 = vadd.f32 %v2327, %v2615
    %v2617 = vpop.f32.mrf.mxu0
    %2618 = vmatprep.mubr.bf16.mxu0 %v2036
    %2619 = vmatmul.mubr.bf16.gmra.mxu0 %v2035
    %v2620 = vpop.f32.mrf.mxu0
    %v2621 = vadd.f32 %v2332, %v2620
    %v2622 = vpop.f32.mrf.mxu0
    %v2623 = vpop.f32.mrf.mxu0
    %v2624 = vadd.f32 %v2335, %v2623
    %v2625 = vpop.f32.mrf.mxu0
    %2626 = vmatprep.mubr.bf16.mxu0 %v2040
    %2627 = vmatmul.mubr.bf16.gmra.mxu0 %v2039
    %v2628 = vpop.f32.mrf.mxu0
    %v2629 = vadd.f32 %v2340, %v2628
    %v2630 = vpop.f32.mrf.mxu0
    %v2631 = vpop.f32.mrf.mxu0
    %v2632 = vadd.f32 %v2343, %v2631
    %v2633 = vpop.f32.mrf.mxu0
    %2634 = vmatprep.mubr.bf16.mxu0 %v2044
    %2635 = vmatmul.mubr.bf16.gmra.mxu0 %v2043
    %v2636 = vpop.f32.mrf.mxu0
    %v2637 = vadd.f32 %v2348, %v2636
    %v2638 = vpop.f32.mrf.mxu0
    %v2639 = vpop.f32.mrf.mxu0
    %v2640 = vadd.f32 %v2351, %v2639
    %v2641 = vpop.f32.mrf.mxu0
    %2642 = vmatprep.mubr.bf16.mxu0 %v2048
    %2643 = vmatmul.mubr.bf16.gmra.mxu0 %v2047
    %v2644 = vpop.f32.mrf.mxu0
    %v2645 = vadd.f32 %v2356, %v2644
    %v2646 = vpop.f32.mrf.mxu0
    %v2647 = vpop.f32.mrf.mxu0
    %v2648 = vadd.f32 %v2359, %v2647
    %v2649 = vpop.f32.mrf.mxu0
    %2650 = vmatprep.mubr.bf16.mxu0 %v2052
    %2651 = vmatmul.mubr.bf16.gmra.mxu0 %v2051
    %v2652 = vpop.f32.mrf.mxu0
    %v2653 = vadd.f32 %v2364, %v2652
    %v2654 = vpop.f32.mrf.mxu0
    %v2655 = vpop.f32.mrf.mxu0
    %v2656 = vadd.f32 %v2367, %v2655
    %v2657 = vpop.f32.mrf.mxu0
    %2658 = vmatprep.mubr.bf16.mxu0 %v2056
    %2659 = vmatmul.mubr.bf16.gmra.mxu0 %v2055
    %v2660 = vpop.f32.mrf.mxu0
    %v2661 = vadd.f32 %v2372, %v2660
    %v2662 = vpop.f32.mrf.mxu0
    %v2663 = vpop.f32.mrf.mxu0
    %v2664 = vadd.f32 %v2375, %v2663
    %v2665 = vpop.f32.mrf.mxu0
    %2666 = vmatprep.mubr.bf16.mxu0 %v2060
    %2667 = vmatmul.mubr.bf16.gmra.mxu0 %v2059
    %v2668 = vpop.f32.mrf.mxu0
    %v2669 = vadd.f32 %v2380, %v2668
    %v2670 = vpop.f32.mrf.mxu0
    %v2671 = vpop.f32.mrf.mxu0
    %v2672 = vadd.f32 %v2383, %v2671
    %v2673 = vpop.f32.mrf.mxu0
    %2674 = vmatprep.mubr.bf16.mxu0 %v2064
    %2675 = vmatmul.mubr.bf16.gmra.mxu0 %v2063
    %v2676 = vpop.f32.mrf.mxu0
    %v2677 = vadd.f32 %v2388, %v2676
    %v2678 = vpop.f32.mrf.mxu0
    %v2679 = vpop.f32.mrf.mxu0
    %v2680 = vadd.f32 %v2391, %v2679
    %v2681 = vpop.f32.mrf.mxu0
    %2682 = vmatprep.mubr.bf16.mxu0 %v2068
    %2683 = vmatmul.mubr.bf16.gmra.mxu0 %v2067
    %v2684 = vpop.f32.mrf.mxu0
    %v2685 = vadd.f32 %v2396, %v2684
    %v2686 = vpop.f32.mrf.mxu0
    %v2687 = vpop.f32.mrf.mxu0
    %v2688 = vadd.f32 %v2399, %v2687
    %v2689 = vpop.f32.mrf.mxu0
    %2690 = vmatprep.mubr.bf16.mxu0 %v2072
    %2691 = vmatmul.mubr.bf16.gmra.mxu0 %v2071
    %v2692 = vpop.f32.mrf.mxu0
    %v2693 = vadd.f32 %v2404, %v2692
    %v2694 = vpop.f32.mrf.mxu0
    %v2695 = vpop.f32.mrf.mxu0
    %v2696 = vadd.f32 %v2407, %v2695
    %v2697 = vpop.f32.mrf.mxu0
    %2698 = vmatprep.mubr.bf16.mxu0 %v2076
    %2699 = vmatmul.mubr.bf16.gmra.mxu0 %v2075
    %v2700 = vpop.f32.mrf.mxu0
    %v2701 = vadd.f32 %v2412, %v2700
    %v2702 = vpop.f32.mrf.mxu0
    %v2703 = vpop.f32.mrf.mxu0
    %v2704 = vadd.f32 %v2415, %v2703
    %v2705 = vpop.f32.mrf.mxu0
    %2706 = vmatprep.mubr.bf16.mxu0 %v2080
    %2707 = vmatmul.mubr.bf16.gmra.mxu0 %v2079
    %v2708 = vpop.f32.mrf.mxu0
    %v2709 = vadd.f32 %v2420, %v2708
    %v2710 = vpop.f32.mrf.mxu0
    %v2711 = vpop.f32.mrf.mxu0
    %v2712 = vadd.f32 %v2423, %v2711
    %v2713 = vpop.f32.mrf.mxu0
    %2714 = vmatprep.mubr.bf16.mxu0 %v2084
    %2715 = vmatmul.mubr.bf16.gmra.mxu0 %v2083
    %v2716 = vpop.f32.mrf.mxu0
    %v2717 = vadd.f32 %v2428, %v2716
    %v2718 = vpop.f32.mrf.mxu0
    %v2719 = vpop.f32.mrf.mxu0
    %v2720 = vadd.f32 %v2431, %v2719
    %v2721 = vpop.f32.mrf.mxu0
    %2722 = vmatprep.mubr.bf16.mxu0 %v2088
    %2723 = vmatmul.mubr.bf16.gmra.mxu0 %v2087
    %v2724 = vpop.f32.mrf.mxu0
    %v2725 = vadd.f32 %v2436, %v2724
    %v2726 = vpop.f32.mrf.mxu0
    %v2727 = vpop.f32.mrf.mxu0
    %v2728 = vadd.f32 %v2439, %v2727
    %v2729 = vpop.f32.mrf.mxu0
    %2730 = vmatprep.mubr.bf16.mxu0 %v2092
    %2731 = vmatmul.mubr.bf16.gmra.mxu0 %v2091
    %v2732 = vpop.f32.mrf.mxu0
    %v2733 = vadd.f32 %v2444, %v2732
    %v2734 = vpop.f32.mrf.mxu0
    %v2735 = vpop.f32.mrf.mxu0
    %v2736 = vadd.f32 %v2447, %v2735
    %v2737 = vpop.f32.mrf.mxu0
    %2738 = vmatprep.mubr.bf16.mxu0 %v2096
    %2739 = vmatmul.mubr.bf16.gmra.mxu0 %v2095
    %v2740 = vpop.f32.mrf.mxu0
    %v2741 = vadd.f32 %v2452, %v2740
    %v2742 = vpop.f32.mrf.mxu0
    %v2743 = vpop.f32.mrf.mxu0
    %v2744 = vadd.f32 %v2455, %v2743
    %v2745 = vpop.f32.mrf.mxu0
    %2746 = vmatprep.mubr.bf16.mxu0 %v2100
    %2747 = vmatmul.mubr.bf16.gmra.mxu0 %v2099
    %v2748 = vpop.f32.mrf.mxu0
    %v2749 = vadd.f32 %v2460, %v2748
    %v2750 = vpop.f32.mrf.mxu0
    %v2751 = vpop.f32.mrf.mxu0
    %v2752 = vadd.f32 %v2463, %v2751
    %v2753 = vpop.f32.mrf.mxu0
    %2754 = vmatprep.mubr.bf16.mxu0 %v2104
    %2755 = vmatmul.mubr.bf16.gmra.mxu0 %v2103
    %v2756 = vpop.f32.mrf.mxu0
    %v2757 = vadd.f32 %v2468, %v2756
    %v2758 = vpop.f32.mrf.mxu0
    %v2759 = vpop.f32.mrf.mxu0
    %v2760 = vadd.f32 %v2471, %v2759
    %v2761 = vpop.f32.mrf.mxu0
    %2762 = vmatprep.mubr.bf16.mxu0 %v2108
    %2763 = vmatmul.mubr.bf16.gmra.mxu0 %v2107
    %v2764 = vpop.f32.mrf.mxu0
    %v2765 = vadd.f32 %v2476, %v2764
    %v2766 = vpop.f32.mrf.mxu0
    %v2767 = vpop.f32.mrf.mxu0
    %v2768 = vadd.f32 %v2479, %v2767
    %v2769 = vpop.f32.mrf.mxu0
    %2770 = vmatprep.mubr.bf16.mxu0 %v2112
    %2771 = vmatmul.mubr.bf16.gmra.mxu0 %v2111
    %v2772 = vpop.f32.mrf.mxu0
    %v2773 = vadd.f32 %v2484, %v2772
    %v2774 = vpop.f32.mrf.mxu0
    %v2775 = vpop.f32.mrf.mxu0
    %v2776 = vadd.f32 %v2487, %v2775
    %v2777 = vpop.f32.mrf.mxu0
    %2778 = vmatprep.mubr.bf16.mxu0 %v2116
    %2779 = vmatmul.mubr.bf16.gmra.mxu0 %v2115
    %v2780 = vpop.f32.mrf.mxu0
    %v2781 = vadd.f32 %v2492, %v2780
    %v2782 = vpop.f32.mrf.mxu0
    %v2783 = vpop.f32.mrf.mxu0
    %v2784 = vadd.f32 %v2495, %v2783
    %v2785 = vpop.f32.mrf.mxu0
    %2786 = vmatprep.mubr.bf16.mxu0 %v2120
    %2787 = vmatmul.mubr.bf16.gmra.mxu0 %v2119
    %v2788 = vpop.f32.mrf.mxu0
    %v2789 = vadd.f32 %v2500, %v2788
    %v2790 = vpop.f32.mrf.mxu0
    %v2791 = vpop.f32.mrf.mxu0
    %v2792 = vadd.f32 %v2503, %v2791
    %v2793 = vpop.f32.mrf.mxu0
    %2794 = vmatprep.mubr.bf16.mxu0 %v2124
    %2795 = vmatmul.mubr.bf16.gmra.mxu0 %v2123
    %v2796 = vpop.f32.mrf.mxu0
    %v2797 = vadd.f32 %v2508, %v2796
    %v2798 = vpop.f32.mrf.mxu0
    %v2799 = vpop.f32.mrf.mxu0
    %v2800 = vadd.f32 %v2511, %v2799
    %v2801 = vpop.f32.mrf.mxu0
    %2802 = vmatprep.mubr.bf16.mxu0 %v2128
    %2803 = vmatmul.mubr.bf16.gmra.mxu0 %v2127
    %v2804 = vpop.f32.mrf.mxu0
    %v2805 = vadd.f32 %v2516, %v2804
    %v2806 = vpop.f32.mrf.mxu0
    %v2807 = vpop.f32.mrf.mxu0
    %v2808 = vadd.f32 %v2519, %v2807
    %v2809 = vpop.f32.mrf.mxu0
    %2810 = vmatprep.mubr.bf16.mxu0 %v2132
    %2811 = vmatmul.mubr.bf16.gmra.mxu0 %v2131
    %v2812 = vpop.f32.mrf.mxu0
    %v2813 = vadd.f32 %v2524, %v2812
    %v2814 = vpop.f32.mrf.mxu0
    %v2815 = vpop.f32.mrf.mxu0
    %v2816 = vadd.f32 %v2527, %v2815
    %v2817 = vpop.f32.mrf.mxu0
    %2818 = vmatprep.mubr.bf16.mxu0 %v2136
    %2819 = vmatmul.mubr.bf16.gmra.mxu0 %v2135
    %v2820 = vpop.f32.mrf.mxu0
    %v2821 = vadd.f32 %v2532, %v2820
    %v2822 = vpop.f32.mrf.mxu0
    %v2823 = vpop.f32.mrf.mxu0
    %v2824 = vadd.f32 %v2535, %v2823
    %v2825 = vpop.f32.mrf.mxu0
    %2826 = vmatprep.mubr.bf16.mxu0 %v2140
    %2827 = vmatmul.mubr.bf16.gmra.mxu0 %v2139
    %v2828 = vpop.f32.mrf.mxu0
    %v2829 = vadd.f32 %v2540, %v2828
    %v2830 = vpop.f32.mrf.mxu0
    %v2831 = vpop.f32.mrf.mxu0
    %v2832 = vadd.f32 %v2543, %v2831
    %v2833 = vpop.f32.mrf.mxu0
    %2834 = vmatprep.mubr.bf16.mxu0 %v2144
    %2835 = vmatmul.mubr.bf16.gmra.mxu0 %v2143
    %v2836 = vpop.f32.mrf.mxu0
    %v2837 = vadd.f32 %v2548, %v2836
    %v2838 = vpop.f32.mrf.mxu0
    %v2839 = vpop.f32.mrf.mxu0
    %v2840 = vadd.f32 %v2551, %v2839
    %v2841 = vpop.f32.mrf.mxu0
    %2842 = vmatprep.mubr.bf16.mxu0 %v2148
    %2843 = vmatmul.mubr.bf16.gmra.mxu0 %v2147
    %v2844 = vpop.f32.mrf.mxu0
    %v2845 = vadd.f32 %v2556, %v2844
    %v2846 = vpop.f32.mrf.mxu0
    %v2847 = vpop.f32.mrf.mxu0
    %v2848 = vadd.f32 %v2559, %v2847
    %v2849 = vpop.f32.mrf.mxu0
    %2850 = vmatprep.mubr.bf16.mxu0 %v2152
    %2851 = vmatmul.mubr.bf16.gmra.mxu0 %v2151
    %v2852 = vpop.f32.mrf.mxu0
    %v2853 = vadd.f32 %v2564, %v2852
    %v2854 = vpop.f32.mrf.mxu0
    %v2855 = vpop.f32.mrf.mxu0
    %v2856 = vadd.f32 %v2567, %v2855
    %v2857 = vpop.f32.mrf.mxu0
    %2858 = vdwg.mxu0
    %v2859 = vmax.f32 %v2605, 0.0
    %v2860 = vmax.f32 %v2608, 0.0
    %v2861 = vmax.f32 %v2613, 0.0
    %v2862 = vmax.f32 %v2616, 0.0
    %v2863 = vmax.f32 %v2621, 0.0
    %v2864 = vmax.f32 %v2624, 0.0
    %v2865 = vmax.f32 %v2629, 0.0
    %v2866 = vmax.f32 %v2632, 0.0
    %v2867 = vmax.f32 %v2637, 0.0
    %v2868 = vmax.f32 %v2640, 0.0
    %v2869 = vmax.f32 %v2645, 0.0
    %v2870 = vmax.f32 %v2648, 0.0
    %v2871 = vmax.f32 %v2653, 0.0
    %v2872 = vmax.f32 %v2656, 0.0
    %v2873 = vmax.f32 %v2661, 0.0
    %v2874 = vmax.f32 %v2664, 0.0
    %v2875 = vmax.f32 %v2669, 0.0
    %v2876 = vmax.f32 %v2672, 0.0
    %v2877 = vmax.f32 %v2677, 0.0
    %v2878 = vmax.f32 %v2680, 0.0
    %v2879 = vmax.f32 %v2685, 0.0
    %v2880 = vmax.f32 %v2688, 0.0
    %v2881 = vmax.f32 %v2693, 0.0
    %v2882 = vmax.f32 %v2696, 0.0
    %v2883 = vmax.f32 %v2701, 0.0
    %v2884 = vmax.f32 %v2704, 0.0
    %v2885 = vmax.f32 %v2709, 0.0
    %v2886 = vmax.f32 %v2712, 0.0
    %v2887 = vmax.f32 %v2717, 0.0
    %v2888 = vmax.f32 %v2720, 0.0
    %v2889 = vmax.f32 %v2725, 0.0
    %v2890 = vmax.f32 %v2728, 0.0
    %v2891 = vmax.f32 %v2733, 0.0
    %v2892 = vmax.f32 %v2736, 0.0
    %v2893 = vmax.f32 %v2741, 0.0
    %v2894 = vmax.f32 %v2744, 0.0
    %v2895 = vmax.f32 %v2749, 0.0
    %v2896 = vmax.f32 %v2752, 0.0
    %v2897 = vmax.f32 %v2757, 0.0
    %v2898 = vmax.f32 %v2760, 0.0
    %v2899 = vmax.f32 %v2765, 0.0
    %v2900 = vmax.f32 %v2768, 0.0
    %v2901 = vmax.f32 %v2773, 0.0
    %v2902 = vmax.f32 %v2776, 0.0
    %v2903 = vmax.f32 %v2781, 0.0
    %v2904 = vmax.f32 %v2784, 0.0
    %v2905 = vmax.f32 %v2789, 0.0
    %v2906 = vmax.f32 %v2792, 0.0
    %v2907 = vmax.f32 %v2797, 0.0
    %v2908 = vmax.f32 %v2800, 0.0
    %v2909 = vmax.f32 %v2805, 0.0
    %v2910 = vmax.f32 %v2808, 0.0
    %v2911 = vmax.f32 %v2813, 0.0
    %v2912 = vmax.f32 %v2816, 0.0
    %v2913 = vmax.f32 %v2821, 0.0
    %v2914 = vmax.f32 %v2824, 0.0
    %v2915 = vmax.f32 %v2829, 0.0
    %v2916 = vmax.f32 %v2832, 0.0
    %v2917 = vmax.f32 %v2837, 0.0
    %v2918 = vmax.f32 %v2840, 0.0
    %v2919 = vmax.f32 %v2845, 0.0
    %v2920 = vmax.f32 %v2848, 0.0
    %v2921 = vmax.f32 %v2853, 0.0
    %v2922 = vmax.f32 %v2856, 0.0
    %v2923 = vpack.c.bf16 %v2860, %v2859
    %v2924 = vpack.c.bf16 %v2862, %v2861
    %v2925 = vpack.c.bf16 %v2864, %v2863
    %v2926 = vpack.c.bf16 %v2866, %v2865
    %v2927 = vpack.c.bf16 %v2868, %v2867
    %v2928 = vpack.c.bf16 %v2870, %v2869
    %v2929 = vpack.c.bf16 %v2872, %v2871
    %v2930 = vpack.c.bf16 %v2874, %v2873
    %v2931 = vpack.c.bf16 %v2876, %v2875
    %v2932 = vpack.c.bf16 %v2878, %v2877
    %v2933 = vpack.c.bf16 %v2880, %v2879
    %v2934 = vpack.c.bf16 %v2882, %v2881
    %v2935 = vpack.c.bf16 %v2884, %v2883
    %v2936 = vpack.c.bf16 %v2886, %v2885
    %v2937 = vpack.c.bf16 %v2888, %v2887
    %v2938 = vpack.c.bf16 %v2890, %v2889
    %v2939 = vpack.c.bf16 %v2892, %v2891
    %v2940 = vpack.c.bf16 %v2894, %v2893
    %v2941 = vpack.c.bf16 %v2896, %v2895
    %v2942 = vpack.c.bf16 %v2898, %v2897
    %v2943 = vpack.c.bf16 %v2900, %v2899
    %v2944 = vpack.c.bf16 %v2902, %v2901
    %v2945 = vpack.c.bf16 %v2904, %v2903
    %v2946 = vpack.c.bf16 %v2906, %v2905
    %v2947 = vpack.c.bf16 %v2908, %v2907
    %v2948 = vpack.c.bf16 %v2910, %v2909
    %v2949 = vpack.c.bf16 %v2912, %v2911
    %v2950 = vpack.c.bf16 %v2914, %v2913
    %v2951 = vpack.c.bf16 %v2916, %v2915
    %v2952 = vpack.c.bf16 %v2918, %v2917
    %v2953 = vpack.c.bf16 %v2920, %v2919
    %v2954 = vpack.c.bf16 %v2922, %v2921
    %v2955 = vld [vmem:[%s5] sm:$0xf]
    %v2956 = vld [vmem:[#allocation2] sm:$0x1]
    %2958 = vset.pattern.permute.xlu0 0
    %2959 = vperm.xlu0 %2958, %v2956
    %v2960 = vpop.permute.xlu0 %2959
    %v2962 = vlaneseq
    %v2963 = vshrl.u32 %v2962, 7
    %v2964 = vsub.s32 0, %v2963
    %v2965 = vrot.slane %v2960, %v2964
    %v2968 = vunpack.c.l.s4 1966171168
    %v2969 = vunpack.c.0.s8 %v2968
    %v2970 = vlaneseq
    %v2971 = vshrl.u32 %v2970, 7
    %v2972 = vsub.s32 %v2969, %v2971
    %v2973 = vrot.slane %v2955, %v2972
    %v2974 = vcombine.high %v2973, %v2973
    %v2976 = vunpack.c.l.s4 1966171168
    %v2977 = vunpack.c.0.s8 %v2976
    %v2978 = vlaneseq
    %v2979 = vshrl.u32 %v2978, 7
    %v2980 = vsub.s32 %v2977, %v2979
    %v2981 = vrot.slane %v2973, %v2980
    %v2983 = vunpack.c.l.s4 1966171168
    %v2984 = vunpack.c.0.s8 %v2983
    %v2985 = vlaneseq
    %v2986 = vshrl.u32 %v2985, 7
    %v2987 = vsub.s32 %v2984, %v2986
    %v2988 = vrot.slane %v2974, %v2987
    %v2989 = vcombine.high %v2981, %v2981
    %v2990 = vcombine.high %v2988, %v2988
    %2995 = vmatprep.subr.bf16.mxu0 0
    %2996 = vmatpush1.bf16.msra.mxu0 %v2930
    %2997 = vmatprep.subr.bf16.mxu0 0
    %2998 = vmatpush1.bf16.msra.mxu0 %v2929
    %2999 = vmatprep.subr.bf16.mxu0 0
    %3000 = vmatpush1.bf16.msra.mxu0 %v2928
    %3001 = vmatprep.subr.bf16.mxu0 0
    %3002 = vmatpush1.bf16.msra.mxu0 %v2927
    %3003 = vmatprep.subr.bf16.mxu0 0
    %3004 = vmatpush1.bf16.msra.mxu0 %v2926
    %3005 = vmatprep.subr.bf16.mxu0 0
    %3006 = vmatpush1.bf16.msra.mxu0 %v2925
    %3007 = vmatprep.subr.bf16.mxu0 0
    %3008 = vmatpush1.bf16.msra.mxu0 %v2924
    %3009 = vmatprep.subr.bf16.mxu0 0
    %3010 = vmatpush1.bf16.msra.mxu0 %v2923
    %3011 = vmatprep.subr.bf16.mxu0 0
    %3012 = vmatpush2.bf16.msra.mxu0 %v2938
    %3013 = vmatprep.subr.bf16.mxu0 0
    %3014 = vmatpush2.bf16.msra.mxu0 %v2937
    %3015 = vmatprep.subr.bf16.mxu0 0
    %3016 = vmatpush2.bf16.msra.mxu0 %v2936
    %3017 = vmatprep.subr.bf16.mxu0 0
    %3018 = vmatpush2.bf16.msra.mxu0 %v2935
    %3019 = vmatprep.subr.bf16.mxu0 0
    %3020 = vmatpush2.bf16.msra.mxu0 %v2934
    %3021 = vmatprep.subr.bf16.mxu0 0
    %3022 = vmatpush2.bf16.msra.mxu0 %v2933
    %3023 = vmatprep.subr.bf16.mxu0 0
    %3024 = vmatpush2.bf16.msra.mxu0 %v2932
    %3025 = vmatprep.subr.bf16.mxu0 0
    %3026 = vmatpush2.bf16.msra.mxu0 %v2931
    %3027 = vmatprep.mubr.bf16.mxu0 %v2988
    %3028 = vmatmul.mubr.bf16.gmra.mxu0 %v2981
    %v3029 = vpop.f32.mrf.mxu0
    %v3030 = vadd.f32 %v2965, %v3029
    %v3031 = vpop.f32.mrf.mxu0
    %v3032 = vpop.f32.mrf.mxu0
    %v3033 = vpop.f32.mrf.mxu0
    %3034 = vdwg.mxu0
    %3035 = vmatprep.subr.bf16.mxu0 0
    %3036 = vmatpush1.bf16.msra.mxu0 %v2946
    %3037 = vmatprep.subr.bf16.mxu0 0
    %3038 = vmatpush1.bf16.msra.mxu0 %v2945
    %3039 = vmatprep.subr.bf16.mxu0 0
    %3040 = vmatpush1.bf16.msra.mxu0 %v2944
    %3041 = vmatprep.subr.bf16.mxu0 0
    %3042 = vmatpush1.bf16.msra.mxu0 %v2943
    %3043 = vmatprep.subr.bf16.mxu0 0
    %3044 = vmatpush1.bf16.msra.mxu0 %v2942
    %3045 = vmatprep.subr.bf16.mxu0 0
    %3046 = vmatpush1.bf16.msra.mxu0 %v2941
    %3047 = vmatprep.subr.bf16.mxu0 0
    %3048 = vmatpush1.bf16.msra.mxu0 %v2940
    %3049 = vmatprep.subr.bf16.mxu0 0
    %3050 = vmatpush1.bf16.msra.mxu0 %v2939
    %3051 = vmatprep.subr.bf16.mxu0 0
    %3052 = vmatpush2.bf16.msra.mxu0 %v2954
    %3053 = vmatprep.subr.bf16.mxu0 0
    %3054 = vmatpush2.bf16.msra.mxu0 %v2953
    %3055 = vmatprep.subr.bf16.mxu0 0
    %3056 = vmatpush2.bf16.msra.mxu0 %v2952
    %3057 = vmatprep.subr.bf16.mxu0 0
    %3058 = vmatpush2.bf16.msra.mxu0 %v2951
    %3059 = vmatprep.subr.bf16.mxu0 0
    %3060 = vmatpush2.bf16.msra.mxu0 %v2950
    %3061 = vmatprep.subr.bf16.mxu0 0
    %3062 = vmatpush2.bf16.msra.mxu0 %v2949
    %3063 = vmatprep.subr.bf16.mxu0 0
    %3064 = vmatpush2.bf16.msra.mxu0 %v2948
    %3065 = vmatprep.subr.bf16.mxu0 0
    %3066 = vmatpush2.bf16.msra.mxu0 %v2947
    %3067 = vmatprep.mubr.bf16.mxu0 %v2990
    %3068 = vmatmul.mubr.bf16.gmra.mxu0 %v2989
    %v3069 = vpop.f32.mrf.mxu0
    %v3070 = vadd.f32 %v3030, %v3069
    %v3071 = vpop.f32.mrf.mxu0
    %v3072 = vpop.f32.mrf.mxu0
    %v3073 = vpop.f32.mrf.mxu0
    %3074 = vdwg.mxu0
    %v3075 = vand.u32 2147483647, %v3070
    %v3076 = vsub.f32 0.0, %v3075
    %v3077 = vmul.f32 %v3076, 1.442695
    %v3078 = vpow.pop %v3077
    %v3079 = vadd.f32 %v3078, 1.0
    %v3080 = vlog2.pop %v3079
    %v3081 = vmul.f32 %v3080, 0.6931472
    %v3082 = vmul.f32 -0.5, %v3078
    %v3083 = vadd.f32 %v3082, 1.0
    %v3084 = vmul.f32 %v3083, %v3078
    %v3085 = vand.u32 2147483647, %v3078
    %vm3086 = vcmp.lt.f32.partialorder %v3085, 0.0004427343
    %v3087 = vsel %vm3086, %v3084, %v3081
    %v3088 = vmax.f32 %v3070, 0.0
    %v3089 = vadd.f32 %v3088, %v3087
    %v3090 = vsub.f32 0.0, %v3089
    %v3091 = vsub.f32 0.0, %v3070
    %v3092 = vmax.f32 %v3091, 0.0
    %v3093 = vadd.f32 %v3092, %v3087
    %v3094 = vsub.f32 0.0, %v3093
    %v3096 = vrot.slane %v3094, 7
    %vm3098 = vcmask 1040384
    %v3099 = vsel %vm3098, %v3090, %v3096
    %3100 = vst [vmem:[#allocation3] sm:$0x3] %v3099
    // Predicated region
    $region30: #{tpu_custom_call.1} parent=1 // pred_check
      _
    $region31: #{tpu_custom_call.1} parent=1 // pred_check_branch
      %3102 = sbr.rel (0) target = $region33
    $region32: #{tpu_custom_call.1} parent=1 // pred_region
      %s3104 = ssub.s32 32, 32
      %3105 = vsyncadd [#allocation4], %s3104
      %s3107 = sshll.u32 [#allocation3], 4
      %s3108 = int_to_ptr.vmem [resolvable:$true] %s3107
      %3110 = dma.vmem_to_hbm [thread:$0]  %s3108, 32, %s7, [#allocation4]
    $region33: #{tpu_custom_call.1} parent=1 // pred_fallthru
      _
    // Predicated region
    $region34: #{tpu_custom_call.1} parent=1 // pred_check
      _
    $region35: #{tpu_custom_call.1} parent=1 // pred_check_branch
      %3112 = sbr.rel (0) target = $region37
    $region36: #{tpu_custom_call.1} parent=1 // pred_region
      %3113 = dma.done [#allocation4], 32
    $region37: #{tpu_custom_call.1} parent=1 // pred_fallthru
      _
    %3114 = vsyncpa [#allocation4], 1

</llo_original>
